<compile_context>
chip_gen: v7x
topology: tpu7x:2x2x1
jax: 0.10.0
libtpu: 0.0.40
codegen_flags: <defaults>
</compile_context>

<pallas_src>
import math

import jax
import jax.numpy as jnp
from jax.experimental import pallas as pl
from jax.experimental.pallas import tpu as pltpu

FP = 128                                   # lane-dense padded feature width
RHS_RESIDENT_MAX_BYTES = 8 * 1024 * 1024   # cap on (double-buffered) resident RHS


# ----------------------------- Pallas kernel --------------------------------
def _make_kernel(*, apply_relu, rhs_resident, fuse_epilogue, acc_in_output, tk):
    """Builds the streamed  out = act(A @ RHS + b) [@ W_epilogue]  kernel body.

    Refs (in order): a_ref [tm,tk] bf16, r_ref (resident [Np,FP] or streamed
    [tk,FP]) bf16, b_ref [1,FP] f32, [w_ref [FP,FP] bf16,] o_ref [tm,FP],
    [acc_ref [tm,FP] f32 scratch].
    """

    def kernel(*refs):
        if fuse_epilogue:
            a_ref, r_ref, b_ref, w_ref = refs[:4]
            rest = refs[4:]
        else:
            a_ref, r_ref, b_ref = refs[:3]
            w_ref = None
            rest = refs[3:]
        if acc_in_output:
            (o_ref,) = rest
            acc_ref = o_ref                 # accumulate straight into the output
        else:
            o_ref, acc_ref = rest

        k = pl.program_id(1)

        @pl.when(k == 0)
        def _():
            acc_ref[...] = jnp.zeros_like(acc_ref)

        if rhs_resident:
            start = pl.multiple_of(k * tk, tk)
            r = r_ref[pl.ds(start, tk), :]
        else:
            r = r_ref[...]
        acc_ref[...] += jnp.dot(a_ref[...], r, preferred_element_type=jnp.float32)

        @pl.when(k == pl.num_programs(1) - 1)
        def _():
            res = acc_ref[...] + b_ref[...]
            if apply_relu:
                res = jnp.maximum(res, 0.0)
            if fuse_epilogue:
                res = jnp.dot(res.astype(w_ref.dtype), w_ref[...],
                              preferred_element_type=jnp.float32)
            o_ref[...] = res.astype(o_ref.dtype)

    return kernel


def _a_stream_matmul(a_bf16, rhs_bf16, bias_f32, w_epilogue=None, *,
                     apply_relu, out_dtype, tm=512, tk=512):
    """act(A @ RHS + bias) [@ W_epilogue], with A streamed tile-by-tile.

    a_bf16     : [Np, Np] bf16   (Np divisible by tm and tk)
    rhs_bf16   : [Np, FP] bf16   (VMEM-resident when small enough)
    bias_f32   : [1,  FP] f32
    w_epilogue : optional [FP, FP] bf16 resident epilogue weight
    returns    : [Np, FP] out_dtype
    """
    Np = a_bf16.shape[0]
    assert Np % tm == 0 and Np % tk == 0
    gm, gk = Np // tm, Np // tk

    rhs_bytes = rhs_bf16.size * rhs_bf16.dtype.itemsize
    rhs_resident = 2 * rhs_bytes <= RHS_RESIDENT_MAX_BYTES
    fuse_epilogue = w_epilogue is not None
    acc_in_output = (jnp.dtype(out_dtype) == jnp.dtype(jnp.float32)
                     and not fuse_epilogue)

    kernel = _make_kernel(apply_relu=apply_relu, rhs_resident=rhs_resident,
                          fuse_epilogue=fuse_epilogue,
                          acc_in_output=acc_in_output, tk=tk)

    in_specs = [pl.BlockSpec((tm, tk), lambda i, k: (i, k))]        # A_hat tile
    operands = [a_bf16]
    if rhs_resident:
        in_specs.append(pl.BlockSpec((Np, FP), lambda i, k: (0, 0)))  # resident RHS
    else:
        in_specs.append(pl.BlockSpec((tk, FP), lambda i, k: (k, 0)))  # streamed RHS
    operands.append(rhs_bf16)
    in_specs.append(pl.BlockSpec((1, FP), lambda i, k: (0, 0)))       # bias
    operands.append(bias_f32)
    if fuse_epilogue:
        in_specs.append(pl.BlockSpec((FP, FP), lambda i, k: (0, 0)))  # W2 pad
        operands.append(w_epilogue)

    scratch_shapes = [] if acc_in_output else [pltpu.VMEM((tm, FP), jnp.float32)]

    flops = 2 * Np * Np * FP + (2 * Np * FP * FP if fuse_epilogue else 0)
    bytes_accessed = (Np * Np * 2                                        # A_hat
                      + (Np * FP * 2 if rhs_resident else gm * Np * FP * 2)
                      + FP * 4
                      + (FP * FP * 2 if fuse_epilogue else 0)
                      + Np * FP * jnp.dtype(out_dtype).itemsize)

    return pl.pallas_call(
        kernel,
        out_shape=jax.ShapeDtypeStruct((Np, FP), out_dtype),
        grid=(gm, gk),
        in_specs=in_specs,
        out_specs=pl.BlockSpec((tm, FP), lambda i, k: (i, 0)),
        scratch_shapes=scratch_shapes,
        compiler_params=pltpu.CompilerParams(
            dimension_semantics=("parallel", "arbitrary"),
            vmem_limit_bytes=48 * 1024 * 1024,
        ),
        cost_estimate=pl.CostEstimate(
            flops=flops, transcendentals=0, bytes_accessed=bytes_accessed),
    )(*operands)


# ------------------------------ wrapper --------------------------------------
def _round_up(x, m):
    return (x + m - 1) // m * m


def _pad2d(m, rows, cols, dtype):
    out = jnp.zeros((rows, cols), dtype)
    return out.at[:m.shape[0], :m.shape[1]].set(m.astype(dtype))


def gnn_encoder_pallas(a_hat, x, w1, b1, w2, b2, *, tm=512, tk=512):
    """out = A_hat @ relu(A_hat @ X @ W1 + b1) @ W2 + b2 (dropout = eval identity)."""
    N = a_hat.shape[0]
    H1, H2 = w1.shape[1], w2.shape[1]
    assert H1 <= FP and H2 <= FP

    Np = _round_up(N, math.lcm(tm, tk))
    # NOTE: correctness of padded rows [N:Np] relies on a_pad's padded COLUMNS
    # being exactly zero: padded rows of the fused layer-1 output equal
    # relu(b1) @ W2 (nonzero when b1 != 0) but are annihilated by those zero
    # columns in layer 2.  _pad2d guarantees this; do not change the padding
    # scheme without revisiting this invariant.
    a_pad = _pad2d(a_hat, Np, Np, jnp.bfloat16)

    # Layer 1 feature transform: X @ W1 is tiny (K = input_dim) -> plain XLA f32.
    xw = x.astype(jnp.float32) @ w1.astype(jnp.float32)              # [N, H1]
    xw_pad = _pad2d(xw, Np, FP, jnp.bfloat16)
    b1_pad = _pad2d(b1.reshape(1, -1), 1, FP, jnp.float32)
    w2_pad = _pad2d(w2, FP, FP, jnp.bfloat16)

    # Fused layer 1 + layer-2 feature transform:
    #   hw = relu(A_hat @ (X W1) + b1) @ W2        (W2 matmul in the finalize)
    hw = _a_stream_matmul(a_pad, xw_pad, b1_pad, w2_pad,
                          apply_relu=True, out_dtype=jnp.bfloat16,
                          tm=tm, tk=tk)                              # [Np, FP]

    # Layer 2 aggregation: out = A_hat @ hw + b2 (accumulated in the output).
    b2_pad = _pad2d(b2.reshape(1, -1), 1, FP, jnp.float32)
    out = _a_stream_matmul(a_pad, hw, b2_pad,
                           apply_relu=False, out_dtype=jnp.float32,
                           tm=tm, tk=tk)                             # [Np, FP]

    return out[:N, :H2]


# ------------------------------ JAX glue -------------------------------------
def build_normalized_adjacency(edge_index, num_nodes):
    """to_undirected + add_self_loops + GCN symmetric normalization (dense)."""
    src, dst = edge_index[0], edge_index[1]
    adj = jnp.zeros((num_nodes, num_nodes), jnp.float32)
    adj = adj.at[src, dst].set(1.0)          # original edges
    adj = adj.at[dst, src].set(1.0)          # to_undirected (coalesced)
    adj = adj + jnp.eye(num_nodes, dtype=jnp.float32)
    adj = jnp.minimum(adj, 1.0)              # dedup any existing self loops
    deg = adj.sum(axis=1)
    d_inv_sqrt = jnp.where(deg > 0, 1.0 / jnp.sqrt(deg), 0.0)
    return adj * d_inv_sqrt[:, None] * d_inv_sqrt[None, :]


def glorot(key, shape):
    fan_in, fan_out = shape
    limit = jnp.sqrt(6.0 / (fan_in + fan_out))
    return jax.random.uniform(key, shape, jnp.float32, -limit, limit)


# ------------------------------- Reference -----------------------------------
def gnn_encoder_ref(a_hat, x, w1, b1, w2, b2):
    h1 = jnp.maximum(a_hat @ (x @ w1) + b1, 0.0)
    return a_hat @ (h1 @ w2) + b2


# --------------------------------- main ---------------------------------------
if __name__ == "__main__":
    # Deterministic problem, sized so the (2, 2) grid exercises both the
    # parallel row axis (even gm=2 for v7x's two TCs) and the k reduction.
    num_nodes = 1024        # N  -> Np = 1024, grid = (2, 2) with tm = tk = 512
    input_dim = 8           # D
    latent_dim = 32
    layer_ratio = 2
    n_conv_layers = 2
    hidden1 = int(latent_dim * layer_ratio ** (n_conv_layers - 1))   # 64
    hidden2 = int(latent_dim * layer_ratio ** (n_conv_layers - 2))   # 32
    num_edges = 4096

    key = jax.random.PRNGKey(0)
    k_x, k_e1, k_e2, k_w1, k_w2 = jax.random.split(key, 5)

    x = jax.random.normal(k_x, (num_nodes, input_dim), jnp.float32)
    edge_index = jnp.stack([
        jax.random.randint(k_e1, (num_edges,), 0, num_nodes),
        jax.random.randint(k_e2, (num_edges,), 0, num_nodes),
    ]).astype(jnp.int32)

    # Deterministic parameter init (Glorot weights, zero biases), like GCNConv.
    w1 = glorot(k_w1, (input_dim, hidden1))
    b1 = jnp.zeros((1, hidden1), jnp.float32)
    w2 = glorot(k_w2, (hidden1, hidden2))
    b2 = jnp.zeros((1, hidden2), jnp.float32)

    a_hat = build_normalized_adjacency(edge_index, num_nodes)

    out = gnn_encoder_pallas(a_hat, x, w1, b1, w2, b2)
    out = jax.block_until_ready(out)

    ref = gnn_encoder_ref(a_hat, x, w1, b1, w2, b2)
    assert out.shape == (num_nodes, hidden2)
    # bf16 operands (f32 accumulation) vs. pure-f32 reference -> loosened tol.
    rel_err = float(jnp.linalg.norm(out - ref) / (jnp.linalg.norm(ref) + 1e-12))
    max_err = float(jnp.max(jnp.abs(out - ref)))
    assert rel_err < 2e-2, f"relative Frobenius error too large: {rel_err}"
    assert jnp.allclose(out, ref, atol=5e-2, rtol=5e-2), (
        f"mismatch vs. JAX reference, max abs err = {max_err}")

    # TODO(synk): Dropout is treated as eval-mode identity; training-mode
    # dropout would need pltpu.prng_* inside the kernel.
    print("KERNEL_OK")
</pallas_src>

<mosaic_0001>
module attributes {stable_mosaic.version = 11 : i64} {
  func.func @kernel(%arg0: i32, %arg1: i32, %arg2: memref<512x512xbf16, #tpu.memory_space<vmem>>, %arg3: memref<1024x128xbf16, #tpu.memory_space<vmem>>, %arg4: memref<1x128xf32, #tpu.memory_space<vmem>>, %arg5: memref<128x128xbf16, #tpu.memory_space<vmem>>, %arg6: memref<512x128xbf16, #tpu.memory_space<vmem>>, %arg7: memref<512x128xf32, #tpu.memory_space<vmem>>) attributes {dimension_semantics = [#tpu.dimension_semantics<parallel>, #tpu.dimension_semantics<arbitrary>], iteration_bounds = array<i64: 2, 2>, scalar_prefetch = 0 : i64, scratch_operands = 1 : i64, tpu.core_type = #tpu.core_type<tc>, window_params = [{transform_indices = @transform_0, window_bounds = array<i64: 512, 512>}, {pipeline_mode = #tpu.pipeline_mode<synchronous>, transform_indices = @transform_1, window_bounds = array<i64: 1024, 128>}, {pipeline_mode = #tpu.pipeline_mode<synchronous>, transform_indices = @transform_2, window_bounds = array<i64: 1, 128>}, {pipeline_mode = #tpu.pipeline_mode<synchronous>, transform_indices = @transform_3, window_bounds = array<i64: 128, 128>}, {transform_indices = @transform_4, window_bounds = array<i64: 512, 128>}]} {
    %c0_i32 = arith.constant 0 : i32
    %0 = arith.cmpi eq, %arg1, %c0_i32 : i32
    %1 = arith.extui %0 : i1 to i32
    %c0_i32_0 = arith.constant 0 : i32
    %2 = arith.cmpi ne, %1, %c0_i32_0 : i32
    scf.if %2 {
      %cst_8 = arith.constant 0.000000e+00 : f32
      %15 = vector.broadcast %cst_8 : f32 to vector<512x128xf32>
      %c0_9 = arith.constant 0 : index
      %c0_10 = arith.constant 0 : index
      %16 = vector.load %arg7[%c0_9, %c0_10] : memref<512x128xf32, #tpu.memory_space<vmem>>, vector<512x128xf32>
      tpu.vector_store %arg7[%c0_9, %c0_10], %15 {strides = array<i32>} : memref<512x128xf32, #tpu.memory_space<vmem>>, vector<512x128xf32>,
    } else {
    }
    %c512_i32 = arith.constant 512 : i32
    %3 = arith.muli %arg1, %c512_i32 : i32
    %4 = tpu.assume_multiple %3, 512 : i32
    %5 = arith.index_cast %4 : i32 to index
    %c0 = arith.constant 0 : index
    %6 = vector.load %arg3[%5, %c0] : memref<1024x128xbf16, #tpu.memory_space<vmem>>, vector<512x128xbf16>
    %c0_1 = arith.constant 0 : index
    %c0_2 = arith.constant 0 : index
    %7 = vector.load %arg7[%c0_1, %c0_2] : memref<512x128xf32, #tpu.memory_space<vmem>>, vector<512x128xf32>
    %c0_3 = arith.constant 0 : index
    %c0_4 = arith.constant 0 : index
    %8 = vector.load %arg2[%c0_3, %c0_4] : memref<512x512xbf16, #tpu.memory_space<vmem>>, vector<512x512xbf16>
    %cst = arith.constant dense<0.000000e+00> : vector<512x128xf32>
    %9 = tpu.matmul %8, %6, %cst {dimension_numbers = #tpu.dot_dimension_numbers<[1], [0], [0], [1], [0, 0, 1, 1], [], []>} : vector<512x512xbf16>, vector<512x128xbf16>, vector<512x128xf32> -> vector<512x128xf32>
    %10 = arith.addf %7, %9 : vector<512x128xf32>
    %c0_5 = arith.constant 0 : index
    %c0_6 = arith.constant 0 : index
    %11 = vector.load %arg7[%c0_5, %c0_6] : memref<512x128xf32, #tpu.memory_space<vmem>>, vector<512x128xf32>
    tpu.vector_store %arg7[%c0_5, %c0_6], %10 {strides = array<i32>} : memref<512x128xf32, #tpu.memory_space<vmem>>, vector<512x128xf32>,
    %c1_i32 = arith.constant 1 : i32
    %12 = arith.cmpi eq, %arg1, %c1_i32 : i32
    %13 = arith.extui %12 : i1 to i32
    %c0_i32_7 = arith.constant 0 : i32
    %14 = arith.cmpi ne, %13, %c0_i32_7 : i32
    scf.if %14 {
      %c0_8 = arith.constant 0 : index
      %c0_9 = arith.constant 0 : index
      %15 = vector.load %arg7[%c0_8, %c0_9] : memref<512x128xf32, #tpu.memory_space<vmem>>, vector<512x128xf32>
      %c0_10 = arith.constant 0 : index
      %c0_11 = arith.constant 0 : index
      %16 = vector.load %arg4[%c0_10, %c0_11] : memref<1x128xf32, #tpu.memory_space<vmem>>, vector<1x128xf32>
      %17 = vector.broadcast %16 : vector<1x128xf32> to vector<512x128xf32>
      %18 = arith.addf %15, %17 : vector<512x128xf32>
      %cst_12 = arith.constant 0.000000e+00 : f32
      %19 = vector.broadcast %cst_12 : f32 to vector<512x128xf32>
      %20 = arith.maximumf %18, %19 : vector<512x128xf32>
      %21 = arith.truncf %20 : vector<512x128xf32> to vector<512x128xbf16>
      %c0_13 = arith.constant 0 : index
      %c0_14 = arith.constant 0 : index
      %22 = vector.load %arg5[%c0_13, %c0_14] : memref<128x128xbf16, #tpu.memory_space<vmem>>, vector<128x128xbf16>
      %cst_15 = arith.constant dense<0.000000e+00> : vector<512x128xf32>
      %23 = tpu.matmul %21, %22, %cst_15 {dimension_numbers = #tpu.dot_dimension_numbers<[1], [0], [0], [1], [0, 0, 1, 1], [], []>} : vector<512x128xbf16>, vector<128x128xbf16>, vector<512x128xf32> -> vector<512x128xf32>
      %24 = arith.truncf %23 : vector<512x128xf32> to vector<512x128xbf16>
      %c0_16 = arith.constant 0 : index
      %c0_17 = arith.constant 0 : index
      %25 = vector.load %arg6[%c0_16, %c0_17] : memref<512x128xbf16, #tpu.memory_space<vmem>>, vector<512x128xbf16>
      tpu.vector_store %arg6[%c0_16, %c0_17], %24 {strides = array<i32>} : memref<512x128xbf16, #tpu.memory_space<vmem>>, vector<512x128xbf16>,
    } else {
    }
    return
  }
  func.func @transform_0(%arg0: i32, %arg1: i32) -> (i32, i32) {
    %c0_i32 = arith.constant 0 : i32
    return %arg0, %arg1 : i32, i32
  }
  func.func @transform_1(%arg0: i32, %arg1: i32) -> (i32, i32) {
    %c0_i32 = arith.constant 0 : i32
    %c0_i32_0 = arith.constant 0 : i32
    %c0_i32_1 = arith.constant 0 : i32
    return %c0_i32, %c0_i32_0 : i32, i32
  }
  func.func @transform_2(%arg0: i32, %arg1: i32) -> (i32, i32) {
    %c0_i32 = arith.constant 0 : i32
    %c0_i32_0 = arith.constant 0 : i32
    %c0_i32_1 = arith.constant 0 : i32
    return %c0_i32, %c0_i32_0 : i32, i32
  }
  func.func @transform_3(%arg0: i32, %arg1: i32) -> (i32, i32) {
    %c0_i32 = arith.constant 0 : i32
    %c0_i32_0 = arith.constant 0 : i32
    %c0_i32_1 = arith.constant 0 : i32
    return %c0_i32, %c0_i32_0 : i32, i32
  }
  func.func @transform_4(%arg0: i32, %arg1: i32) -> (i32, i32) {
    %c0_i32 = arith.constant 0 : i32
    %c0_i32_0 = arith.constant 0 : i32
    return %arg0, %c0_i32 : i32, i32
  }
}

</mosaic_0001>

<llo_original>
// kernel: tpu_custom_call.1
$region0: #{tpu_custom_call.1}
  #allocation0 [shape = 'u32[]', space=smem, size = 0x4, offset = 0x4, fixed_abs, tag = 'smem constant byte address 0x4 - core index']
  #allocation1 [shape = 'u32[144,128]{1,0:T(1,128)}', space=vmem, size = 0x12000, scoped, tag = 'internal scratch']
  #allocation2 [shape = 'f32[512,128]{1,0:T(8,128)}', space=vmem, size = 0x40000, scoped, tag = 'scratch operand']
  %s0 = inlined_call_operand.hbm [shape: bf16[1024,1024], index: 0, kind: input, shape index: {}]
  %s1 = inlined_call_operand.hbm [shape: bf16[1024,128], index: 1, kind: input, shape index: {}]
  %s2 = inlined_call_operand.hbm [shape: f32[1,128], index: 2, kind: input, shape index: {}]
  %s3 = inlined_call_operand.hbm [shape: bf16[128,128], index: 3, kind: input, shape index: {}]
  %s4 = inlined_call_operand.hbm [shape: bf16[1024,128], index: 4, kind: output, shape index: {}]
  %s5 = sld [smem:[#allocation0]]
  $region73: #{tpu_custom_call.1} parent=0
    _
  %s7 = ssub.s32 1, %s5
  %s8 = scalar_select 0, %s7, %s5
  $region1: #{tpu_custom_call.1} parent=0
    #allocation3 [shape = 'u8[1048576]{0}', space=vmem, size = 0x100000, scoped, tag = 'input window, operand 0']
    #allocation4 [shape = 's32[2]{0}', space=sflag, size = 0x8, scoped, tag = 'scoped memory for tpu_custom_call.1']
    #allocation5 [shape = 's32[2]{0}', space=sflag, size = 0x8, scoped, tag = 'scoped memory for tpu_custom_call.1']
    #allocation6 [shape = 'u8[262144]{0}', space=vmem, size = 0x40000, scoped, tag = 'input window, operand 1, single buffered']
    #allocation7 [shape = 's32[1]{0}', space=sflag, size = 0x4, scoped, tag = 'scoped memory for tpu_custom_call.1']
    #allocation8 [shape = 'u8[512]{0}', space=vmem, size = 0x400, scoped, tag = 'input window, operand 2, single buffered']
    #allocation9 [shape = 'u8[32768]{0}', space=vmem, size = 0x8000, scoped, tag = 'input window, operand 3, single buffered']
    #allocation10 [shape = 's32[1]{0}', space=sflag, size = 0x4, scoped, tag = 'scoped memory for tpu_custom_call.1']
    #allocation11 [shape = 'u8[262144]{0}', space=vmem, size = 0x40000, scoped, tag = 'output window, operand 0']
    %9 = vsyncpa [#allocation4], 0
    %s10 = scalar_lea.sflag [#allocation4], 1
    %11 = vsyncpa %s10, 0
    %12 = vsyncpa [#allocation7], 0
    %13 = vsyncpa [#allocation10], 0
    %14 = vsyncpa [#allocation5], 0
    %s15 = scalar_lea.sflag [#allocation5], 1
    %16 = vsyncpa %s15, 0
    loop: start=0, step=1, limit=6
    $region2: #{tpu_custom_call.1} parent=1 // loop_pre_header
      _
    $region3: #{tpu_custom_call.1} parent=1 // loop_header
      %s18 = sphi 0, %s22
      %p19 = scmp.ge.s32.totalorder %s18, 6
      %s25 = sphi 0, %s37
      %s26 = sphi 0, %s33
      %s27 = sphi 0, %s25
      %s28 = sphi 0, %s26
      %s29 = sphi 0, %s27
      %s30 = sphi 0, %s28
      %s42 = sphi 0, %s44
      %s45 = sphi 0, %s42
      %s46 = sphi 0, %s45
      %s62 = sphi 0, %s46
      %s66 = sphi 0, %s66
      %s68 = sphi 0, %s66
      %s69 = sphi 0, %s68
      %s83 = sphi 0, %s69
      %s87 = sphi 0, %s87
      %s89 = sphi 0, %s87
      %s90 = sphi 0, %s89
      %s104 = sphi 0, %s90
      %s108 = sphi 0, %s108
      %s110 = sphi 0, %s108
      %s111 = sphi 0, %s110
      %s125 = sphi 0, %s111
      %s131 = sphi 0, %s133
      %s134 = sphi 0, %s131
      %s135 = sphi 0, %s134
      %s151 = sphi 0, %s135
    $region4: #{tpu_custom_call.1} parent=1 // loop_header_branch
      %21 = sbr.rel (%p19) target = $region8
    $region5: #{tpu_custom_call.1} parent=1 // loop_body
      %s23 = ssub.s32 %s18, 1
      %s24 = ssub.s32 %s18, 2
      %s31 = sadd.s32 1, %s26
      %p32 = scmp.ge.s32.totalorder %s31, 2
      %s33 = scalar_select %p32, 0, %s31
      %s34 = sadd.s32 1, %s25
      %s35 = scalar_select %p32, %s34, %s25
      %p36 = scmp.ge.s32.totalorder %s35, 2
      %s37 = scalar_select %p36, 0, %s35
      %s38 = ssub.s32 %s25, %s37
      %s39 = ssub.s32 %s26, %s33
      %s40 = sor.u32 %s38, %s39
      %p41 = scmp.eq.s32.totalorder %s40, 0
      %s43 = sadd.s32 %s42, 1
      %s44 = scalar_select %p41, %s42, %s43
      %p47 = pneg %p41
      %p48 = scmp.eq.s32.totalorder %s18, 3
      %p49 = por %p47, %p48
      %p50 = scmp.ne.s32.totalorder %s42, %s45
      %p51 = scmp.eq.s32.totalorder %s18, 0
      %p52 = por %p50, %p51
      %p53 = scmp.ne.s32.totalorder %s42, %s45
      %p54 = scmp.eq.s32.totalorder %s23, 3
      %p55 = por %p53, %p54
      %p56 = scmp.ne.s32.totalorder %s45, %s46
      %p57 = scmp.eq.s32.totalorder %s23, 0
      %p58 = por %p56, %p57
      %p59 = scmp.ne.s32.totalorder %s45, %s46
      %p60 = scmp.eq.s32.totalorder %s24, 3
      %p61 = por %p59, %p60
      %p63 = scmp.ne.s32.totalorder %s46, %s62
      %p64 = scmp.eq.s32.totalorder %s24, 0
      %p65 = por %p63, %p64
      %s67 = sadd.s32 %s66, 1
      %p70 = scmp.eq.s32.totalorder %s18, 3
      %p71 = scmp.ne.s32.totalorder %s66, %s68
      %p72 = scmp.eq.s32.totalorder %s18, 0
      %p73 = por %p71, %p72
      %p74 = scmp.ne.s32.totalorder %s66, %s68
      %p75 = scmp.eq.s32.totalorder %s23, 3
      %p76 = por %p74, %p75
      %p77 = scmp.ne.s32.totalorder %s68, %s69
      %p78 = scmp.eq.s32.totalorder %s23, 0
      %p79 = por %p77, %p78
      %p80 = scmp.ne.s32.totalorder %s68, %s69
      %p81 = scmp.eq.s32.totalorder %s24, 3
      %p82 = por %p80, %p81
      %p84 = scmp.ne.s32.totalorder %s69, %s83
      %p85 = scmp.eq.s32.totalorder %s24, 0
      %p86 = por %p84, %p85
      %s88 = sadd.s32 %s87, 1
      %p91 = scmp.eq.s32.totalorder %s18, 3
      %p92 = scmp.ne.s32.totalorder %s87, %s89
      %p93 = scmp.eq.s32.totalorder %s18, 0
      %p94 = por %p92, %p93
      %p95 = scmp.ne.s32.totalorder %s87, %s89
      %p96 = scmp.eq.s32.totalorder %s23, 3
      %p97 = por %p95, %p96
      %p98 = scmp.ne.s32.totalorder %s89, %s90
      %p99 = scmp.eq.s32.totalorder %s23, 0
      %p100 = por %p98, %p99
      %p101 = scmp.ne.s32.totalorder %s89, %s90
      %p102 = scmp.eq.s32.totalorder %s24, 3
      %p103 = por %p101, %p102
      %p105 = scmp.ne.s32.totalorder %s90, %s104
      %p106 = scmp.eq.s32.totalorder %s24, 0
      %p107 = por %p105, %p106
      %s109 = sadd.s32 %s108, 1
      %p112 = scmp.eq.s32.totalorder %s18, 3
      %p113 = scmp.ne.s32.totalorder %s108, %s110
      %p114 = scmp.eq.s32.totalorder %s18, 0
      %p115 = por %p113, %p114
      %p116 = scmp.ne.s32.totalorder %s108, %s110
      %p117 = scmp.eq.s32.totalorder %s23, 3
      %p118 = por %p116, %p117
      %p119 = scmp.ne.s32.totalorder %s110, %s111
      %p120 = scmp.eq.s32.totalorder %s23, 0
      %p121 = por %p119, %p120
      %p122 = scmp.ne.s32.totalorder %s110, %s111
      %p123 = scmp.eq.s32.totalorder %s24, 3
      %p124 = por %p122, %p123
      %p126 = scmp.ne.s32.totalorder %s111, %s125
      %p127 = scmp.eq.s32.totalorder %s24, 0
      %p128 = por %p126, %p127
      %s129 = ssub.s32 %s25, %s37
      %p130 = scmp.eq.s32.totalorder %s129, 0
      %s132 = sadd.s32 %s131, 1
      %s133 = scalar_select %p130, %s131, %s132
      %p136 = pneg %p130
      %p137 = scmp.eq.s32.totalorder %s18, 3
      %p138 = por %p136, %p137
      %p139 = scmp.ne.s32.totalorder %s131, %s134
      %p140 = scmp.eq.s32.totalorder %s18, 0
      %p141 = por %p139, %p140
      %p142 = scmp.ne.s32.totalorder %s131, %s134
      %p143 = scmp.eq.s32.totalorder %s23, 3
      %p144 = por %p142, %p143
      %p145 = scmp.ne.s32.totalorder %s134, %s135
      %p146 = scmp.eq.s32.totalorder %s23, 0
      %p147 = por %p145, %p146
      %p148 = scmp.ne.s32.totalorder %s134, %s135
      %p149 = scmp.eq.s32.totalorder %s24, 3
      %p150 = por %p148, %p149
      %p152 = scmp.ne.s32.totalorder %s135, %s151
      %p153 = scmp.eq.s32.totalorder %s24, 0
      %p154 = por %p152, %p153
      %p155 = scmp.le.s32.totalorder 1, %s18
      %p156 = scmp.lt.s32.totalorder %s18, 5
      %p157 = pnand %p155, %p156
      %p158 = pneg %p157
      // Predicated region
      $region9: #{tpu_custom_call.1} parent=5 // pred_check
        _
      $region10: #{tpu_custom_call.1} parent=5 // pred_check_branch
        %160 = sbr.rel (%p157) target = $region12
      $region11: #{tpu_custom_call.1} parent=5 // pred_region
        %s161 = ssub.s32 %s18, 1
        // Predicated region
        $region13: #{tpu_custom_call.1} parent=11 // pred_check
          %p162 = pneg %p79
        $region14: #{tpu_custom_call.1} parent=11 // pred_check_branch
          %164 = sbr.rel (%p162) target = $region16
        $region15: #{tpu_custom_call.1} parent=11 // pred_region
          %s166 = ssub.s32 8192, 8192
          %167 = vsyncadd [#allocation7], %s166
          %s168 = sshll.u32 [#allocation6], 4
          %s169 = int_to_ptr.vmem [resolvable:$true] %s168
          %174 = dma.hbm_to_vmem [thread:$0]  %s1, 8192, %s169, [#allocation7], 64, 64, 4
        $region16: #{tpu_custom_call.1} parent=11 // pred_fallthru
          _
        // Predicated region
        $region17: #{tpu_custom_call.1} parent=11 // pred_check
          %p175 = pneg %p100
        $region18: #{tpu_custom_call.1} parent=11 // pred_check_branch
          %177 = sbr.rel (%p175) target = $region20
        $region19: #{tpu_custom_call.1} parent=11 // pred_region
          %s179 = ssub.s32 16, 16
          %180 = vsyncadd [#allocation7], %s179
          %s182 = sshll.u32 [#allocation8], 4
          %s183 = int_to_ptr.vmem [resolvable:$true] %s182
          %185 = dma.hbm_to_vmem [thread:$0]  %s2, 16, %s183, [#allocation7]
        $region20: #{tpu_custom_call.1} parent=11 // pred_fallthru
          _
        // Predicated region
        $region21: #{tpu_custom_call.1} parent=11 // pred_check
          %p186 = pneg %p121
        $region22: #{tpu_custom_call.1} parent=11 // pred_check_branch
          %188 = sbr.rel (%p186) target = $region24
        $region23: #{tpu_custom_call.1} parent=11 // pred_region
          %s190 = ssub.s32 1024, 1024
          %191 = vsyncadd [#allocation10], %s190
          %s192 = sshll.u32 [#allocation9], 4
          %s193 = int_to_ptr.vmem [resolvable:$true] %s192
          %198 = dma.hbm_to_vmem [thread:$0]  %s3, 1024, %s193, [#allocation10], 64, 64, 4
        $region24: #{tpu_custom_call.1} parent=11 // pred_fallthru
          _
      $region12: #{tpu_custom_call.1} parent=5 // pred_fallthru
        _
      %p199 = scmp.lt.s32.totalorder %s18, 4
      // Predicated region
      $region25: #{tpu_custom_call.1} parent=5 // pred_check
        %p200 = pneg %p199
      $region26: #{tpu_custom_call.1} parent=5 // pred_check_branch
        %202 = sbr.rel (%p200) target = $region28
      $region27: #{tpu_custom_call.1} parent=5 // pred_region
        // Predicated region
        $region29: #{tpu_custom_call.1} parent=27 // pred_check
          %p203 = pneg %p52
        $region30: #{tpu_custom_call.1} parent=27 // pred_check_branch
          %205 = sbr.rel (%p203) target = $region32
        $region31: #{tpu_custom_call.1} parent=27 // pred_region
          %s206 = sand.u32 %s42, 1
          %s207 = scalar_lea.sflag [#allocation4], %s206
          %s208 = sand.u32 %s42, 1
          %s209 = smul.addr %s208, 1024
          %s210 = scalar_lea.vmem [#allocation3], %s209
          %s211 = smul.u32 64, %s25
          %s212 = smul.u32 4, %s26
          %s214 = ssub.s32 16384, 16384
          %215 = vsyncadd %s207, %s214
          %s216 = smul.addr %s211, 8
          %s217 = sadd.s32 %s212, %s216
          %s218 = smul.addr %s217, 64
          %s219 = scalar_lea.hbm %s0, %s218
          %s220 = sshll.u32 %s210, 4
          %s221 = int_to_ptr.vmem [resolvable:$true] %s220
          %226 = dma.hbm_to_vmem [thread:$0]  %s219, 16384, %s221, %s207, 512, 256, 16
        $region32: #{tpu_custom_call.1} parent=27 // pred_fallthru
          _
      $region28: #{tpu_custom_call.1} parent=5 // pred_fallthru
        _
      %p227 = scmp.le.s32.totalorder 1, %s18
      %p228 = scmp.lt.s32.totalorder %s18, 5
      %p229 = pnand %p227, %p228
      %p230 = pneg %p229
      // Predicated region
      $region33: #{tpu_custom_call.1} parent=5 // pred_check
        _
      $region34: #{tpu_custom_call.1} parent=5 // pred_check_branch
        %232 = sbr.rel (%p229) target = $region36
      $region35: #{tpu_custom_call.1} parent=5 // pred_region
        %s233 = ssub.s32 %s18, 1
        %s234 = sand.u32 %s45, 1
        %s235 = scalar_lea.sflag [#allocation4], %s234
        %s236 = sand.u32 %s45, 1
        %s237 = smul.addr %s236, 1024
        %s238 = scalar_lea.vmem [#allocation3], %s237
        // Predicated region
        $region37: #{tpu_custom_call.1} parent=35 // pred_check
          %p239 = pneg %p58
        $region38: #{tpu_custom_call.1} parent=35 // pred_check_branch
          %241 = sbr.rel (%p239) target = $region40
        $region39: #{tpu_custom_call.1} parent=35 // pred_region
          %242 = dma.done %s235, 16384
        $region40: #{tpu_custom_call.1} parent=35 // pred_fallthru
          _
        // Predicated region
        $region41: #{tpu_custom_call.1} parent=35 // pred_check
          %p243 = pneg %p79
        $region42: #{tpu_custom_call.1} parent=35 // pred_check_branch
          %245 = sbr.rel (%p243) target = $region44
        $region43: #{tpu_custom_call.1} parent=35 // pred_region
          %246 = dma.done [#allocation7], 8192
        $region44: #{tpu_custom_call.1} parent=35 // pred_fallthru
          _
        // Predicated region
        $region45: #{tpu_custom_call.1} parent=35 // pred_check
          %p247 = pneg %p100
        $region46: #{tpu_custom_call.1} parent=35 // pred_check_branch
          %249 = sbr.rel (%p247) target = $region48
        $region47: #{tpu_custom_call.1} parent=35 // pred_region
          %250 = dma.done [#allocation7], 16
        $region48: #{tpu_custom_call.1} parent=35 // pred_fallthru
          _
        // Predicated region
        $region49: #{tpu_custom_call.1} parent=35 // pred_check
          %p251 = pneg %p121
        $region50: #{tpu_custom_call.1} parent=35 // pred_check_branch
          %253 = sbr.rel (%p251) target = $region52
        $region51: #{tpu_custom_call.1} parent=35 // pred_region
          %254 = dma.done [#allocation10], 1024
        $region52: #{tpu_custom_call.1} parent=35 // pred_fallthru
          _
        %s255 = sand.u32 %s45, 1
        %s256 = scalar_lea.sflag [#allocation4], %s255
        %s257 = sand.u32 %s45, 1
        %s258 = smul.addr %s257, 1024
        %s259 = scalar_lea.vmem [#allocation3], %s258
        %p260 = pneg %p58
        %p261 = pneg %p55
        %p262 = pneg %p79
        %p263 = pneg %p76
        %p264 = pneg %p100
        %p265 = pneg %p97
        %p266 = pneg %p121
        %p267 = pneg %p118
        %p268 = pneg %p147
        %p269 = pneg %p144
        %s270 = sand.u32 %s134, 1
        %s271 = scalar_lea.sflag [#allocation5], %s270
        %s272 = sand.u32 %s134, 1
        %s273 = smul.addr %s272, 256
        %s274 = scalar_lea.vmem [#allocation11], %s273
        %s275 = smul.u32 64, %s27
        %s276 = smul.u32 4, %s28
        %s277 = smul.u32 64, %s27
        %p279 = scmp.eq.s32.totalorder %s28, 0
        // Predicated region
        $region53: #{tpu_custom_call.1} parent=35 // pred_check
          %p280 = pneg %p279
        $region54: #{tpu_custom_call.1} parent=35 // pred_check_branch
          %282 = sbr.rel (%p280) target = $region56
        $region55: #{tpu_custom_call.1} parent=35 // pred_region
          %283 = vst [vmem:[#allocation2] sm:$0xff] 0.0
          %284 = vst [vmem:[#allocation2 + $0x8] sm:$0xff] 0.0
          %285 = vst [vmem:[#allocation2 + $0x10] sm:$0xff] 0.0
          %286 = vst [vmem:[#allocation2 + $0x18] sm:$0xff] 0.0
          %287 = vst [vmem:[#allocation2 + $0x20] sm:$0xff] 0.0
          %288 = vst [vmem:[#allocation2 + $0x28] sm:$0xff] 0.0
          %289 = vst [vmem:[#allocation2 + $0x30] sm:$0xff] 0.0
          %290 = vst [vmem:[#allocation2 + $0x38] sm:$0xff] 0.0
          %291 = vst [vmem:[#allocation2 + $0x40] sm:$0xff] 0.0
          %292 = vst [vmem:[#allocation2 + $0x48] sm:$0xff] 0.0
          %293 = vst [vmem:[#allocation2 + $0x50] sm:$0xff] 0.0
          %294 = vst [vmem:[#allocation2 + $0x58] sm:$0xff] 0.0
          %295 = vst [vmem:[#allocation2 + $0x60] sm:$0xff] 0.0
          %296 = vst [vmem:[#allocation2 + $0x68] sm:$0xff] 0.0
          %297 = vst [vmem:[#allocation2 + $0x70] sm:$0xff] 0.0
          %298 = vst [vmem:[#allocation2 + $0x78] sm:$0xff] 0.0
          %299 = vst [vmem:[#allocation2 + $0x80] sm:$0xff] 0.0
          %300 = vst [vmem:[#allocation2 + $0x88] sm:$0xff] 0.0
          %301 = vst [vmem:[#allocation2 + $0x90] sm:$0xff] 0.0
          %302 = vst [vmem:[#allocation2 + $0x98] sm:$0xff] 0.0
          %303 = vst [vmem:[#allocation2 + $0xa0] sm:$0xff] 0.0
          %304 = vst [vmem:[#allocation2 + $0xa8] sm:$0xff] 0.0
          %305 = vst [vmem:[#allocation2 + $0xb0] sm:$0xff] 0.0
          %306 = vst [vmem:[#allocation2 + $0xb8] sm:$0xff] 0.0
          %307 = vst [vmem:[#allocation2 + $0xc0] sm:$0xff] 0.0
          %308 = vst [vmem:[#allocation2 + $0xc8] sm:$0xff] 0.0
          %309 = vst [vmem:[#allocation2 + $0xd0] sm:$0xff] 0.0
          %310 = vst [vmem:[#allocation2 + $0xd8] sm:$0xff] 0.0
          %311 = vst [vmem:[#allocation2 + $0xe0] sm:$0xff] 0.0
          %312 = vst [vmem:[#allocation2 + $0xe8] sm:$0xff] 0.0
          %313 = vst [vmem:[#allocation2 + $0xf0] sm:$0xff] 0.0
          %314 = vst [vmem:[#allocation2 + $0xf8] sm:$0xff] 0.0
          %315 = vst [vmem:[#allocation2 + $0x100] sm:$0xff] 0.0
          %316 = vst [vmem:[#allocation2 + $0x108] sm:$0xff] 0.0
          %317 = vst [vmem:[#allocation2 + $0x110] sm:$0xff] 0.0
          %318 = vst [vmem:[#allocation2 + $0x118] sm:$0xff] 0.0
          %319 = vst [vmem:[#allocation2 + $0x120] sm:$0xff] 0.0
          %320 = vst [vmem:[#allocation2 + $0x128] sm:$0xff] 0.0
          %321 = vst [vmem:[#allocation2 + $0x130] sm:$0xff] 0.0
          %322 = vst [vmem:[#allocation2 + $0x138] sm:$0xff] 0.0
          %323 = vst [vmem:[#allocation2 + $0x140] sm:$0xff] 0.0
          %324 = vst [vmem:[#allocation2 + $0x148] sm:$0xff] 0.0
          %325 = vst [vmem:[#allocation2 + $0x150] sm:$0xff] 0.0
          %326 = vst [vmem:[#allocation2 + $0x158] sm:$0xff] 0.0
          %327 = vst [vmem:[#allocation2 + $0x160] sm:$0xff] 0.0
          %328 = vst [vmem:[#allocation2 + $0x168] sm:$0xff] 0.0
          %329 = vst [vmem:[#allocation2 + $0x170] sm:$0xff] 0.0
          %330 = vst [vmem:[#allocation2 + $0x178] sm:$0xff] 0.0
          %331 = vst [vmem:[#allocation2 + $0x180] sm:$0xff] 0.0
          %332 = vst [vmem:[#allocation2 + $0x188] sm:$0xff] 0.0
          %333 = vst [vmem:[#allocation2 + $0x190] sm:$0xff] 0.0
          %334 = vst [vmem:[#allocation2 + $0x198] sm:$0xff] 0.0
          %335 = vst [vmem:[#allocation2 + $0x1a0] sm:$0xff] 0.0
          %336 = vst [vmem:[#allocation2 + $0x1a8] sm:$0xff] 0.0
          %337 = vst [vmem:[#allocation2 + $0x1b0] sm:$0xff] 0.0
          %338 = vst [vmem:[#allocation2 + $0x1b8] sm:$0xff] 0.0
          %339 = vst [vmem:[#allocation2 + $0x1c0] sm:$0xff] 0.0
          %340 = vst [vmem:[#allocation2 + $0x1c8] sm:$0xff] 0.0
          %341 = vst [vmem:[#allocation2 + $0x1d0] sm:$0xff] 0.0
          %342 = vst [vmem:[#allocation2 + $0x1d8] sm:$0xff] 0.0
          %343 = vst [vmem:[#allocation2 + $0x1e0] sm:$0xff] 0.0
          %344 = vst [vmem:[#allocation2 + $0x1e8] sm:$0xff] 0.0
          %345 = vst [vmem:[#allocation2 + $0x1f0] sm:$0xff] 0.0
          %346 = vst [vmem:[#allocation2 + $0x1f8] sm:$0xff] 0.0
        $region56: #{tpu_custom_call.1} parent=35 // pred_fallthru
          _
        %s347 = smul.u32 %s28, 512
        %s348 = sshra.s32 %s347, 3
        %s349 = sand.u32 %s347, 7
        %s350 = smul.addr %s348, 4
        %s351 = scalar_lea.vmem [#allocation6], %s350
        %v352 = vld [vmem:[%s351] sm:$0xf]
        %v353 = vld [vmem:[%s351 + $0x4] sm:$0xf]
        %v354 = vld [vmem:[%s351 + $0x8] sm:$0xf]
        %v355 = vld [vmem:[%s351 + $0xc] sm:$0xf]
        %v356 = vld [vmem:[%s351 + $0x10] sm:$0xf]
        %v357 = vld [vmem:[%s351 + $0x14] sm:$0xf]
        %v358 = vld [vmem:[%s351 + $0x18] sm:$0xf]
        %v359 = vld [vmem:[%s351 + $0x1c] sm:$0xf]
        %v360 = vld [vmem:[%s351 + $0x20] sm:$0xf]
        %v361 = vld [vmem:[%s351 + $0x24] sm:$0xf]
        %v362 = vld [vmem:[%s351 + $0x28] sm:$0xf]
        %v363 = vld [vmem:[%s351 + $0x2c] sm:$0xf]
        %v364 = vld [vmem:[%s351 + $0x30] sm:$0xf]
        %v365 = vld [vmem:[%s351 + $0x34] sm:$0xf]
        %v366 = vld [vmem:[%s351 + $0x38] sm:$0xf]
        %v367 = vld [vmem:[%s351 + $0x3c] sm:$0xf]
        %v368 = vld [vmem:[%s351 + $0x40] sm:$0xf]
        %v369 = vld [vmem:[%s351 + $0x44] sm:$0xf]
        %v370 = vld [vmem:[%s351 + $0x48] sm:$0xf]
        %v371 = vld [vmem:[%s351 + $0x4c] sm:$0xf]
        %v372 = vld [vmem:[%s351 + $0x50] sm:$0xf]
        %v373 = vld [vmem:[%s351 + $0x54] sm:$0xf]
        %v374 = vld [vmem:[%s351 + $0x58] sm:$0xf]
        %v375 = vld [vmem:[%s351 + $0x5c] sm:$0xf]
        %v376 = vld [vmem:[%s351 + $0x60] sm:$0xf]
        %v377 = vld [vmem:[%s351 + $0x64] sm:$0xf]
        %v378 = vld [vmem:[%s351 + $0x68] sm:$0xf]
        %v379 = vld [vmem:[%s351 + $0x6c] sm:$0xf]
        %v380 = vld [vmem:[%s351 + $0x70] sm:$0xf]
        %v381 = vld [vmem:[%s351 + $0x74] sm:$0xf]
        %v382 = vld [vmem:[%s351 + $0x78] sm:$0xf]
        %v383 = vld [vmem:[%s351 + $0x7c] sm:$0xf]
        %v384 = vld [vmem:[%s351 + $0x80] sm:$0xf]
        %v385 = vld [vmem:[%s351 + $0x84] sm:$0xf]
        %v386 = vld [vmem:[%s351 + $0x88] sm:$0xf]
        %v387 = vld [vmem:[%s351 + $0x8c] sm:$0xf]
        %v388 = vld [vmem:[%s351 + $0x90] sm:$0xf]
        %v389 = vld [vmem:[%s351 + $0x94] sm:$0xf]
        %v390 = vld [vmem:[%s351 + $0x98] sm:$0xf]
        %v391 = vld [vmem:[%s351 + $0x9c] sm:$0xf]
        %v392 = vld [vmem:[%s351 + $0xa0] sm:$0xf]
        %v393 = vld [vmem:[%s351 + $0xa4] sm:$0xf]
        %v394 = vld [vmem:[%s351 + $0xa8] sm:$0xf]
        %v395 = vld [vmem:[%s351 + $0xac] sm:$0xf]
        %v396 = vld [vmem:[%s351 + $0xb0] sm:$0xf]
        %v397 = vld [vmem:[%s351 + $0xb4] sm:$0xf]
        %v398 = vld [vmem:[%s351 + $0xb8] sm:$0xf]
        %v399 = vld [vmem:[%s351 + $0xbc] sm:$0xf]
        %v400 = vld [vmem:[%s351 + $0xc0] sm:$0xf]
        %v401 = vld [vmem:[%s351 + $0xc4] sm:$0xf]
        %v402 = vld [vmem:[%s351 + $0xc8] sm:$0xf]
        %v403 = vld [vmem:[%s351 + $0xcc] sm:$0xf]
        %v404 = vld [vmem:[%s351 + $0xd0] sm:$0xf]
        %v405 = vld [vmem:[%s351 + $0xd4] sm:$0xf]
        %v406 = vld [vmem:[%s351 + $0xd8] sm:$0xf]
        %v407 = vld [vmem:[%s351 + $0xdc] sm:$0xf]
        %v408 = vld [vmem:[%s351 + $0xe0] sm:$0xf]
        %v409 = vld [vmem:[%s351 + $0xe4] sm:$0xf]
        %v410 = vld [vmem:[%s351 + $0xe8] sm:$0xf]
        %v411 = vld [vmem:[%s351 + $0xec] sm:$0xf]
        %v412 = vld [vmem:[%s351 + $0xf0] sm:$0xf]
        %v413 = vld [vmem:[%s351 + $0xf4] sm:$0xf]
        %v414 = vld [vmem:[%s351 + $0xf8] sm:$0xf]
        %v415 = vld [vmem:[%s351 + $0xfc] sm:$0xf]
        %v416 = vld [vmem:[#allocation2] sm:$0xff]
        %v417 = vld [vmem:[#allocation2 + $0x8] sm:$0xff]
        %v418 = vld [vmem:[#allocation2 + $0x10] sm:$0xff]
        %v419 = vld [vmem:[#allocation2 + $0x18] sm:$0xff]
        %v420 = vld [vmem:[#allocation2 + $0x20] sm:$0xff]
        %v421 = vld [vmem:[#allocation2 + $0x28] sm:$0xff]
        %v422 = vld [vmem:[#allocation2 + $0x30] sm:$0xff]
        %v423 = vld [vmem:[#allocation2 + $0x38] sm:$0xff]
        %v424 = vld [vmem:[#allocation2 + $0x40] sm:$0xff]
        %v425 = vld [vmem:[#allocation2 + $0x48] sm:$0xff]
        %v426 = vld [vmem:[#allocation2 + $0x50] sm:$0xff]
        %v427 = vld [vmem:[#allocation2 + $0x58] sm:$0xff]
        %v428 = vld [vmem:[#allocation2 + $0x60] sm:$0xff]
        %v429 = vld [vmem:[#allocation2 + $0x68] sm:$0xff]
        %v430 = vld [vmem:[#allocation2 + $0x70] sm:$0xff]
        %v431 = vld [vmem:[#allocation2 + $0x78] sm:$0xff]
        %v432 = vld [vmem:[#allocation2 + $0x80] sm:$0xff]
        %v433 = vld [vmem:[#allocation2 + $0x88] sm:$0xff]
        %v434 = vld [vmem:[#allocation2 + $0x90] sm:$0xff]
        %v435 = vld [vmem:[#allocation2 + $0x98] sm:$0xff]
        %v436 = vld [vmem:[#allocation2 + $0xa0] sm:$0xff]
        %v437 = vld [vmem:[#allocation2 + $0xa8] sm:$0xff]
        %v438 = vld [vmem:[#allocation2 + $0xb0] sm:$0xff]
        %v439 = vld [vmem:[#allocation2 + $0xb8] sm:$0xff]
        %v440 = vld [vmem:[#allocation2 + $0xc0] sm:$0xff]
        %v441 = vld [vmem:[#allocation2 + $0xc8] sm:$0xff]
        %v442 = vld [vmem:[#allocation2 + $0xd0] sm:$0xff]
        %v443 = vld [vmem:[#allocation2 + $0xd8] sm:$0xff]
        %v444 = vld [vmem:[#allocation2 + $0xe0] sm:$0xff]
        %v445 = vld [vmem:[#allocation2 + $0xe8] sm:$0xff]
        %v446 = vld [vmem:[#allocation2 + $0xf0] sm:$0xff]
        %v447 = vld [vmem:[#allocation2 + $0xf8] sm:$0xff]
        %v448 = vld [vmem:[#allocation2 + $0x100] sm:$0xff]
        %v449 = vld [vmem:[#allocation2 + $0x108] sm:$0xff]
        %v450 = vld [vmem:[#allocation2 + $0x110] sm:$0xff]
        %v451 = vld [vmem:[#allocation2 + $0x118] sm:$0xff]
        %v452 = vld [vmem:[#allocation2 + $0x120] sm:$0xff]
        %v453 = vld [vmem:[#allocation2 + $0x128] sm:$0xff]
        %v454 = vld [vmem:[#allocation2 + $0x130] sm:$0xff]
        %v455 = vld [vmem:[#allocation2 + $0x138] sm:$0xff]
        %v456 = vld [vmem:[#allocation2 + $0x140] sm:$0xff]
        %v457 = vld [vmem:[#allocation2 + $0x148] sm:$0xff]
        %v458 = vld [vmem:[#allocation2 + $0x150] sm:$0xff]
        %v459 = vld [vmem:[#allocation2 + $0x158] sm:$0xff]
        %v460 = vld [vmem:[#allocation2 + $0x160] sm:$0xff]
        %v461 = vld [vmem:[#allocation2 + $0x168] sm:$0xff]
        %v462 = vld [vmem:[#allocation2 + $0x170] sm:$0xff]
        %v463 = vld [vmem:[#allocation2 + $0x178] sm:$0xff]
        %v464 = vld [vmem:[#allocation2 + $0x180] sm:$0xff]
        %v465 = vld [vmem:[#allocation2 + $0x188] sm:$0xff]
        %v466 = vld [vmem:[#allocation2 + $0x190] sm:$0xff]
        %v467 = vld [vmem:[#allocation2 + $0x198] sm:$0xff]
        %v468 = vld [vmem:[#allocation2 + $0x1a0] sm:$0xff]
        %v469 = vld [vmem:[#allocation2 + $0x1a8] sm:$0xff]
        %v470 = vld [vmem:[#allocation2 + $0x1b0] sm:$0xff]
        %v471 = vld [vmem:[#allocation2 + $0x1b8] sm:$0xff]
        %v472 = vld [vmem:[#allocation2 + $0x1c0] sm:$0xff]
        %v473 = vld [vmem:[#allocation2 + $0x1c8] sm:$0xff]
        %v474 = vld [vmem:[#allocation2 + $0x1d0] sm:$0xff]
        %v475 = vld [vmem:[#allocation2 + $0x1d8] sm:$0xff]
        %v476 = vld [vmem:[#allocation2 + $0x1e0] sm:$0xff]
        %v477 = vld [vmem:[#allocation2 + $0x1e8] sm:$0xff]
        %v478 = vld [vmem:[#allocation2 + $0x1f0] sm:$0xff]
        %v479 = vld [vmem:[#allocation2 + $0x1f8] sm:$0xff]
        %v480 = vld [vmem:[%s238] sm:$0xff]
        %v481 = vld [vmem:[%s238 + $0x8] sm:$0xff]
        %v482 = vld [vmem:[%s238 + $0x10] sm:$0xff]
        %v483 = vld [vmem:[%s238 + $0x18] sm:$0xff]
        %v484 = vld [vmem:[%s238 + $0x20] sm:$0xff]
        %v485 = vld [vmem:[%s238 + $0x28] sm:$0xff]
        %v486 = vld [vmem:[%s238 + $0x30] sm:$0xff]
        %v487 = vld [vmem:[%s238 + $0x38] sm:$0xff]
        %v488 = vld [vmem:[%s238 + $0x40] sm:$0xff]
        %v489 = vld [vmem:[%s238 + $0x48] sm:$0xff]
        %v490 = vld [vmem:[%s238 + $0x50] sm:$0xff]
        %v491 = vld [vmem:[%s238 + $0x58] sm:$0xff]
        %v492 = vld [vmem:[%s238 + $0x60] sm:$0xff]
        %v493 = vld [vmem:[%s238 + $0x68] sm:$0xff]
        %v494 = vld [vmem:[%s238 + $0x70] sm:$0xff]
        %v495 = vld [vmem:[%s238 + $0x78] sm:$0xff]
        %v496 = vld [vmem:[%s238 + $0x80] sm:$0xff]
        %v497 = vld [vmem:[%s238 + $0x88] sm:$0xff]
        %v498 = vld [vmem:[%s238 + $0x90] sm:$0xff]
        %v499 = vld [vmem:[%s238 + $0x98] sm:$0xff]
        %v500 = vld [vmem:[%s238 + $0xa0] sm:$0xff]
        %v501 = vld [vmem:[%s238 + $0xa8] sm:$0xff]
        %v502 = vld [vmem:[%s238 + $0xb0] sm:$0xff]
        %v503 = vld [vmem:[%s238 + $0xb8] sm:$0xff]
        %v504 = vld [vmem:[%s238 + $0xc0] sm:$0xff]
        %v505 = vld [vmem:[%s238 + $0xc8] sm:$0xff]
        %v506 = vld [vmem:[%s238 + $0xd0] sm:$0xff]
        %v507 = vld [vmem:[%s238 + $0xd8] sm:$0xff]
        %v508 = vld [vmem:[%s238 + $0xe0] sm:$0xff]
        %v509 = vld [vmem:[%s238 + $0xe8] sm:$0xff]
        %v510 = vld [vmem:[%s238 + $0xf0] sm:$0xff]
        %v511 = vld [vmem:[%s238 + $0xf8] sm:$0xff]
        %v512 = vld [vmem:[%s238 + $0x100] sm:$0xff]
        %v513 = vld [vmem:[%s238 + $0x108] sm:$0xff]
        %v514 = vld [vmem:[%s238 + $0x110] sm:$0xff]
        %v515 = vld [vmem:[%s238 + $0x118] sm:$0xff]
        %v516 = vld [vmem:[%s238 + $0x120] sm:$0xff]
        %v517 = vld [vmem:[%s238 + $0x128] sm:$0xff]
        %v518 = vld [vmem:[%s238 + $0x130] sm:$0xff]
        %v519 = vld [vmem:[%s238 + $0x138] sm:$0xff]
        %v520 = vld [vmem:[%s238 + $0x140] sm:$0xff]
        %v521 = vld [vmem:[%s238 + $0x148] sm:$0xff]
        %v522 = vld [vmem:[%s238 + $0x150] sm:$0xff]
        %v523 = vld [vmem:[%s238 + $0x158] sm:$0xff]
        %v524 = vld [vmem:[%s238 + $0x160] sm:$0xff]
        %v525 = vld [vmem:[%s238 + $0x168] sm:$0xff]
        %v526 = vld [vmem:[%s238 + $0x170] sm:$0xff]
        %v527 = vld [vmem:[%s238 + $0x178] sm:$0xff]
        %v528 = vld [vmem:[%s238 + $0x180] sm:$0xff]
        %v529 = vld [vmem:[%s238 + $0x188] sm:$0xff]
        %v530 = vld [vmem:[%s238 + $0x190] sm:$0xff]
        %v531 = vld [vmem:[%s238 + $0x198] sm:$0xff]
        %v532 = vld [vmem:[%s238 + $0x1a0] sm:$0xff]
        %v533 = vld [vmem:[%s238 + $0x1a8] sm:$0xff]
        %v534 = vld [vmem:[%s238 + $0x1b0] sm:$0xff]
        %v535 = vld [vmem:[%s238 + $0x1b8] sm:$0xff]
        %v536 = vld [vmem:[%s238 + $0x1c0] sm:$0xff]
        %v537 = vld [vmem:[%s238 + $0x1c8] sm:$0xff]
        %v538 = vld [vmem:[%s238 + $0x1d0] sm:$0xff]
        %v539 = vld [vmem:[%s238 + $0x1d8] sm:$0xff]
        %v540 = vld [vmem:[%s238 + $0x1e0] sm:$0xff]
        %v541 = vld [vmem:[%s238 + $0x1e8] sm:$0xff]
        %v542 = vld [vmem:[%s238 + $0x1f0] sm:$0xff]
        %v543 = vld [vmem:[%s238 + $0x1f8] sm:$0xff]
        %v544 = vld [vmem:[%s238 + $0x200] sm:$0xff]
        %v545 = vld [vmem:[%s238 + $0x208] sm:$0xff]
        %v546 = vld [vmem:[%s238 + $0x210] sm:$0xff]
        %v547 = vld [vmem:[%s238 + $0x218] sm:$0xff]
        %v548 = vld [vmem:[%s238 + $0x220] sm:$0xff]
        %v549 = vld [vmem:[%s238 + $0x228] sm:$0xff]
        %v550 = vld [vmem:[%s238 + $0x230] sm:$0xff]
        %v551 = vld [vmem:[%s238 + $0x238] sm:$0xff]
        %v552 = vld [vmem:[%s238 + $0x240] sm:$0xff]
        %v553 = vld [vmem:[%s238 + $0x248] sm:$0xff]
        %v554 = vld [vmem:[%s238 + $0x250] sm:$0xff]
        %v555 = vld [vmem:[%s238 + $0x258] sm:$0xff]
        %v556 = vld [vmem:[%s238 + $0x260] sm:$0xff]
        %v557 = vld [vmem:[%s238 + $0x268] sm:$0xff]
        %v558 = vld [vmem:[%s238 + $0x270] sm:$0xff]
        %v559 = vld [vmem:[%s238 + $0x278] sm:$0xff]
        %v560 = vld [vmem:[%s238 + $0x280] sm:$0xff]
        %v561 = vld [vmem:[%s238 + $0x288] sm:$0xff]
        %v562 = vld [vmem:[%s238 + $0x290] sm:$0xff]
        %v563 = vld [vmem:[%s238 + $0x298] sm:$0xff]
        %v564 = vld [vmem:[%s238 + $0x2a0] sm:$0xff]
        %v565 = vld [vmem:[%s238 + $0x2a8] sm:$0xff]
        %v566 = vld [vmem:[%s238 + $0x2b0] sm:$0xff]
        %v567 = vld [vmem:[%s238 + $0x2b8] sm:$0xff]
        %v568 = vld [vmem:[%s238 + $0x2c0] sm:$0xff]
        %v569 = vld [vmem:[%s238 + $0x2c8] sm:$0xff]
        %v570 = vld [vmem:[%s238 + $0x2d0] sm:$0xff]
        %v571 = vld [vmem:[%s238 + $0x2d8] sm:$0xff]
        %v572 = vld [vmem:[%s238 + $0x2e0] sm:$0xff]
        %v573 = vld [vmem:[%s238 + $0x2e8] sm:$0xff]
        %v574 = vld [vmem:[%s238 + $0x2f0] sm:$0xff]
        %v575 = vld [vmem:[%s238 + $0x2f8] sm:$0xff]
        %v576 = vld [vmem:[%s238 + $0x300] sm:$0xff]
        %v577 = vld [vmem:[%s238 + $0x308] sm:$0xff]
        %v578 = vld [vmem:[%s238 + $0x310] sm:$0xff]
        %v579 = vld [vmem:[%s238 + $0x318] sm:$0xff]
        %v580 = vld [vmem:[%s238 + $0x320] sm:$0xff]
        %v581 = vld [vmem:[%s238 + $0x328] sm:$0xff]
        %v582 = vld [vmem:[%s238 + $0x330] sm:$0xff]
        %v583 = vld [vmem:[%s238 + $0x338] sm:$0xff]
        %v584 = vld [vmem:[%s238 + $0x340] sm:$0xff]
        %v585 = vld [vmem:[%s238 + $0x348] sm:$0xff]
        %v586 = vld [vmem:[%s238 + $0x350] sm:$0xff]
        %v587 = vld [vmem:[%s238 + $0x358] sm:$0xff]
        %v588 = vld [vmem:[%s238 + $0x360] sm:$0xff]
        %v589 = vld [vmem:[%s238 + $0x368] sm:$0xff]
        %v590 = vld [vmem:[%s238 + $0x370] sm:$0xff]
        %v591 = vld [vmem:[%s238 + $0x378] sm:$0xff]
        %v592 = vld [vmem:[%s238 + $0x380] sm:$0xff]
        %v593 = vld [vmem:[%s238 + $0x388] sm:$0xff]
        %v594 = vld [vmem:[%s238 + $0x390] sm:$0xff]
        %v595 = vld [vmem:[%s238 + $0x398] sm:$0xff]
        %v596 = vld [vmem:[%s238 + $0x3a0] sm:$0xff]
        %v597 = vld [vmem:[%s238 + $0x3a8] sm:$0xff]
        %v598 = vld [vmem:[%s238 + $0x3b0] sm:$0xff]
        %v599 = vld [vmem:[%s238 + $0x3b8] sm:$0xff]
        %v600 = vld [vmem:[%s238 + $0x3c0] sm:$0xff]
        %v601 = vld [vmem:[%s238 + $0x3c8] sm:$0xff]
        %v602 = vld [vmem:[%s238 + $0x3d0] sm:$0xff]
        %v603 = vld [vmem:[%s238 + $0x3d8] sm:$0xff]
        %v604 = vld [vmem:[%s238 + $0x3e0] sm:$0xff]
        %v605 = vld [vmem:[%s238 + $0x3e8] sm:$0xff]
        %v606 = vld [vmem:[%s238 + $0x3f0] sm:$0xff]
        %v607 = vld [vmem:[%s238 + $0x3f8] sm:$0xff]
        %v736 = vunpack.c.l.b16 %v480
        %v737 = vunpack.c.h.b16 %v480
        %v738 = vunpack.c.l.b16 %v481
        %v739 = vunpack.c.h.b16 %v481
        %v740 = vunpack.c.l.b16 %v482
        %v741 = vunpack.c.h.b16 %v482
        %v742 = vunpack.c.l.b16 %v483
        %v743 = vunpack.c.h.b16 %v483
        %v744 = vunpack.c.l.b16 %v484
        %v745 = vunpack.c.h.b16 %v484
        %v746 = vunpack.c.l.b16 %v485
        %v747 = vunpack.c.h.b16 %v485
        %v748 = vunpack.c.l.b16 %v486
        %v749 = vunpack.c.h.b16 %v486
        %v750 = vunpack.c.l.b16 %v487
        %v751 = vunpack.c.h.b16 %v487
        %v752 = vunpack.c.l.b16 %v488
        %v753 = vunpack.c.h.b16 %v488
        %v754 = vunpack.c.l.b16 %v489
        %v755 = vunpack.c.h.b16 %v489
        %v756 = vunpack.c.l.b16 %v490
        %v757 = vunpack.c.h.b16 %v490
        %v758 = vunpack.c.l.b16 %v491
        %v759 = vunpack.c.h.b16 %v491
        %v760 = vunpack.c.l.b16 %v492
        %v761 = vunpack.c.h.b16 %v492
        %v762 = vunpack.c.l.b16 %v493
        %v763 = vunpack.c.h.b16 %v493
        %v764 = vunpack.c.l.b16 %v494
        %v765 = vunpack.c.h.b16 %v494
        %v766 = vunpack.c.l.b16 %v495
        %v767 = vunpack.c.h.b16 %v495
        %v768 = vunpack.c.l.b16 %v496
        %v769 = vunpack.c.h.b16 %v496
        %v770 = vunpack.c.l.b16 %v497
        %v771 = vunpack.c.h.b16 %v497
        %v772 = vunpack.c.l.b16 %v498
        %v773 = vunpack.c.h.b16 %v498
        %v774 = vunpack.c.l.b16 %v499
        %v775 = vunpack.c.h.b16 %v499
        %v776 = vunpack.c.l.b16 %v500
        %v777 = vunpack.c.h.b16 %v500
        %v778 = vunpack.c.l.b16 %v501
        %v779 = vunpack.c.h.b16 %v501
        %v780 = vunpack.c.l.b16 %v502
        %v781 = vunpack.c.h.b16 %v502
        %v782 = vunpack.c.l.b16 %v503
        %v783 = vunpack.c.h.b16 %v503
        %v784 = vunpack.c.l.b16 %v504
        %v785 = vunpack.c.h.b16 %v504
        %v786 = vunpack.c.l.b16 %v505
        %v787 = vunpack.c.h.b16 %v505
        %v788 = vunpack.c.l.b16 %v506
        %v789 = vunpack.c.h.b16 %v506
        %v790 = vunpack.c.l.b16 %v507
        %v791 = vunpack.c.h.b16 %v507
        %v792 = vunpack.c.l.b16 %v508
        %v793 = vunpack.c.h.b16 %v508
        %v794 = vunpack.c.l.b16 %v509
        %v795 = vunpack.c.h.b16 %v509
        %v796 = vunpack.c.l.b16 %v510
        %v797 = vunpack.c.h.b16 %v510
        %v798 = vunpack.c.l.b16 %v511
        %v799 = vunpack.c.h.b16 %v511
        %v800 = vunpack.c.l.b16 %v512
        %v801 = vunpack.c.h.b16 %v512
        %v802 = vunpack.c.l.b16 %v513
        %v803 = vunpack.c.h.b16 %v513
        %v804 = vunpack.c.l.b16 %v514
        %v805 = vunpack.c.h.b16 %v514
        %v806 = vunpack.c.l.b16 %v515
        %v807 = vunpack.c.h.b16 %v515
        %v808 = vunpack.c.l.b16 %v516
        %v809 = vunpack.c.h.b16 %v516
        %v810 = vunpack.c.l.b16 %v517
        %v811 = vunpack.c.h.b16 %v517
        %v812 = vunpack.c.l.b16 %v518
        %v813 = vunpack.c.h.b16 %v518
        %v814 = vunpack.c.l.b16 %v519
        %v815 = vunpack.c.h.b16 %v519
        %v816 = vunpack.c.l.b16 %v520
        %v817 = vunpack.c.h.b16 %v520
        %v818 = vunpack.c.l.b16 %v521
        %v819 = vunpack.c.h.b16 %v521
        %v820 = vunpack.c.l.b16 %v522
        %v821 = vunpack.c.h.b16 %v522
        %v822 = vunpack.c.l.b16 %v523
        %v823 = vunpack.c.h.b16 %v523
        %v824 = vunpack.c.l.b16 %v524
        %v825 = vunpack.c.h.b16 %v524
        %v826 = vunpack.c.l.b16 %v525
        %v827 = vunpack.c.h.b16 %v525
        %v828 = vunpack.c.l.b16 %v526
        %v829 = vunpack.c.h.b16 %v526
        %v830 = vunpack.c.l.b16 %v527
        %v831 = vunpack.c.h.b16 %v527
        %v832 = vunpack.c.l.b16 %v528
        %v833 = vunpack.c.h.b16 %v528
        %v834 = vunpack.c.l.b16 %v529
        %v835 = vunpack.c.h.b16 %v529
        %v836 = vunpack.c.l.b16 %v530
        %v837 = vunpack.c.h.b16 %v530
        %v838 = vunpack.c.l.b16 %v531
        %v839 = vunpack.c.h.b16 %v531
        %v840 = vunpack.c.l.b16 %v532
        %v841 = vunpack.c.h.b16 %v532
        %v842 = vunpack.c.l.b16 %v533
        %v843 = vunpack.c.h.b16 %v533
        %v844 = vunpack.c.l.b16 %v534
        %v845 = vunpack.c.h.b16 %v534
        %v846 = vunpack.c.l.b16 %v535
        %v847 = vunpack.c.h.b16 %v535
        %v848 = vunpack.c.l.b16 %v536
        %v849 = vunpack.c.h.b16 %v536
        %v850 = vunpack.c.l.b16 %v537
        %v851 = vunpack.c.h.b16 %v537
        %v852 = vunpack.c.l.b16 %v538
        %v853 = vunpack.c.h.b16 %v538
        %v854 = vunpack.c.l.b16 %v539
        %v855 = vunpack.c.h.b16 %v539
        %v856 = vunpack.c.l.b16 %v540
        %v857 = vunpack.c.h.b16 %v540
        %v858 = vunpack.c.l.b16 %v541
        %v859 = vunpack.c.h.b16 %v541
        %v860 = vunpack.c.l.b16 %v542
        %v861 = vunpack.c.h.b16 %v542
        %v862 = vunpack.c.l.b16 %v543
        %v863 = vunpack.c.h.b16 %v543
        %v864 = vunpack.c.l.b16 %v544
        %v865 = vunpack.c.h.b16 %v544
        %v866 = vunpack.c.l.b16 %v545
        %v867 = vunpack.c.h.b16 %v545
        %v868 = vunpack.c.l.b16 %v546
        %v869 = vunpack.c.h.b16 %v546
        %v870 = vunpack.c.l.b16 %v547
        %v871 = vunpack.c.h.b16 %v547
        %v872 = vunpack.c.l.b16 %v548
        %v873 = vunpack.c.h.b16 %v548
        %v874 = vunpack.c.l.b16 %v549
        %v875 = vunpack.c.h.b16 %v549
        %v876 = vunpack.c.l.b16 %v550
        %v877 = vunpack.c.h.b16 %v550
        %v878 = vunpack.c.l.b16 %v551
        %v879 = vunpack.c.h.b16 %v551
        %v880 = vunpack.c.l.b16 %v552
        %v881 = vunpack.c.h.b16 %v552
        %v882 = vunpack.c.l.b16 %v553
        %v883 = vunpack.c.h.b16 %v553
        %v884 = vunpack.c.l.b16 %v554
        %v885 = vunpack.c.h.b16 %v554
        %v886 = vunpack.c.l.b16 %v555
        %v887 = vunpack.c.h.b16 %v555
        %v888 = vunpack.c.l.b16 %v556
        %v889 = vunpack.c.h.b16 %v556
        %v890 = vunpack.c.l.b16 %v557
        %v891 = vunpack.c.h.b16 %v557
        %v892 = vunpack.c.l.b16 %v558
        %v893 = vunpack.c.h.b16 %v558
        %v894 = vunpack.c.l.b16 %v559
        %v895 = vunpack.c.h.b16 %v559
        %v896 = vunpack.c.l.b16 %v560
        %v897 = vunpack.c.h.b16 %v560
        %v898 = vunpack.c.l.b16 %v561
        %v899 = vunpack.c.h.b16 %v561
        %v900 = vunpack.c.l.b16 %v562
        %v901 = vunpack.c.h.b16 %v562
        %v902 = vunpack.c.l.b16 %v563
        %v903 = vunpack.c.h.b16 %v563
        %v904 = vunpack.c.l.b16 %v564
        %v905 = vunpack.c.h.b16 %v564
        %v906 = vunpack.c.l.b16 %v565
        %v907 = vunpack.c.h.b16 %v565
        %v908 = vunpack.c.l.b16 %v566
        %v909 = vunpack.c.h.b16 %v566
        %v910 = vunpack.c.l.b16 %v567
        %v911 = vunpack.c.h.b16 %v567
        %v912 = vunpack.c.l.b16 %v568
        %v913 = vunpack.c.h.b16 %v568
        %v914 = vunpack.c.l.b16 %v569
        %v915 = vunpack.c.h.b16 %v569
        %v916 = vunpack.c.l.b16 %v570
        %v917 = vunpack.c.h.b16 %v570
        %v918 = vunpack.c.l.b16 %v571
        %v919 = vunpack.c.h.b16 %v571
        %v920 = vunpack.c.l.b16 %v572
        %v921 = vunpack.c.h.b16 %v572
        %v922 = vunpack.c.l.b16 %v573
        %v923 = vunpack.c.h.b16 %v573
        %v924 = vunpack.c.l.b16 %v574
        %v925 = vunpack.c.h.b16 %v574
        %v926 = vunpack.c.l.b16 %v575
        %v927 = vunpack.c.h.b16 %v575
        %v928 = vunpack.c.l.b16 %v576
        %v929 = vunpack.c.h.b16 %v576
        %v930 = vunpack.c.l.b16 %v577
        %v931 = vunpack.c.h.b16 %v577
        %v932 = vunpack.c.l.b16 %v578
        %v933 = vunpack.c.h.b16 %v578
        %v934 = vunpack.c.l.b16 %v579
        %v935 = vunpack.c.h.b16 %v579
        %v936 = vunpack.c.l.b16 %v580
        %v937 = vunpack.c.h.b16 %v580
        %v938 = vunpack.c.l.b16 %v581
        %v939 = vunpack.c.h.b16 %v581
        %v940 = vunpack.c.l.b16 %v582
        %v941 = vunpack.c.h.b16 %v582
        %v942 = vunpack.c.l.b16 %v583
        %v943 = vunpack.c.h.b16 %v583
        %v944 = vunpack.c.l.b16 %v584
        %v945 = vunpack.c.h.b16 %v584
        %v946 = vunpack.c.l.b16 %v585
        %v947 = vunpack.c.h.b16 %v585
        %v948 = vunpack.c.l.b16 %v586
        %v949 = vunpack.c.h.b16 %v586
        %v950 = vunpack.c.l.b16 %v587
        %v951 = vunpack.c.h.b16 %v587
        %v952 = vunpack.c.l.b16 %v588
        %v953 = vunpack.c.h.b16 %v588
        %v954 = vunpack.c.l.b16 %v589
        %v955 = vunpack.c.h.b16 %v589
        %v956 = vunpack.c.l.b16 %v590
        %v957 = vunpack.c.h.b16 %v590
        %v958 = vunpack.c.l.b16 %v591
        %v959 = vunpack.c.h.b16 %v591
        %v960 = vunpack.c.l.b16 %v592
        %v961 = vunpack.c.h.b16 %v592
        %v962 = vunpack.c.l.b16 %v593
        %v963 = vunpack.c.h.b16 %v593
        %v964 = vunpack.c.l.b16 %v594
        %v965 = vunpack.c.h.b16 %v594
        %v966 = vunpack.c.l.b16 %v595
        %v967 = vunpack.c.h.b16 %v595
        %v968 = vunpack.c.l.b16 %v596
        %v969 = vunpack.c.h.b16 %v596
        %v970 = vunpack.c.l.b16 %v597
        %v971 = vunpack.c.h.b16 %v597
        %v972 = vunpack.c.l.b16 %v598
        %v973 = vunpack.c.h.b16 %v598
        %v974 = vunpack.c.l.b16 %v599
        %v975 = vunpack.c.h.b16 %v599
        %v976 = vunpack.c.l.b16 %v600
        %v977 = vunpack.c.h.b16 %v600
        %v978 = vunpack.c.l.b16 %v601
        %v979 = vunpack.c.h.b16 %v601
        %v980 = vunpack.c.l.b16 %v602
        %v981 = vunpack.c.h.b16 %v602
        %v982 = vunpack.c.l.b16 %v603
        %v983 = vunpack.c.h.b16 %v603
        %v984 = vunpack.c.l.b16 %v604
        %v985 = vunpack.c.h.b16 %v604
        %v986 = vunpack.c.l.b16 %v605
        %v987 = vunpack.c.h.b16 %v605
        %v988 = vunpack.c.l.b16 %v606
        %v989 = vunpack.c.h.b16 %v606
        %v990 = vunpack.c.l.b16 %v607
        %v991 = vunpack.c.h.b16 %v607
        %v992 = vpack.c.b16 %v740, %v736
        %v993 = vpack.c.b16 %v741, %v737
        %v994 = vpack.c.b16 %v742, %v738
        %v995 = vpack.c.b16 %v743, %v739
        %v996 = vpack.c.b16 %v748, %v744
        %v997 = vpack.c.b16 %v749, %v745
        %v998 = vpack.c.b16 %v750, %v746
        %v999 = vpack.c.b16 %v751, %v747
        %v1000 = vpack.c.b16 %v756, %v752
        %v1001 = vpack.c.b16 %v757, %v753
        %v1002 = vpack.c.b16 %v758, %v754
        %v1003 = vpack.c.b16 %v759, %v755
        %v1004 = vpack.c.b16 %v764, %v760
        %v1005 = vpack.c.b16 %v765, %v761
        %v1006 = vpack.c.b16 %v766, %v762
        %v1007 = vpack.c.b16 %v767, %v763
        %v1008 = vpack.c.b16 %v772, %v768
        %v1009 = vpack.c.b16 %v773, %v769
        %v1010 = vpack.c.b16 %v774, %v770
        %v1011 = vpack.c.b16 %v775, %v771
        %v1012 = vpack.c.b16 %v780, %v776
        %v1013 = vpack.c.b16 %v781, %v777
        %v1014 = vpack.c.b16 %v782, %v778
        %v1015 = vpack.c.b16 %v783, %v779
        %v1016 = vpack.c.b16 %v788, %v784
        %v1017 = vpack.c.b16 %v789, %v785
        %v1018 = vpack.c.b16 %v790, %v786
        %v1019 = vpack.c.b16 %v791, %v787
        %v1020 = vpack.c.b16 %v796, %v792
        %v1021 = vpack.c.b16 %v797, %v793
        %v1022 = vpack.c.b16 %v798, %v794
        %v1023 = vpack.c.b16 %v799, %v795
        %v1024 = vpack.c.b16 %v804, %v800
        %v1025 = vpack.c.b16 %v805, %v801
        %v1026 = vpack.c.b16 %v806, %v802
        %v1027 = vpack.c.b16 %v807, %v803
        %v1028 = vpack.c.b16 %v812, %v808
        %v1029 = vpack.c.b16 %v813, %v809
        %v1030 = vpack.c.b16 %v814, %v810
        %v1031 = vpack.c.b16 %v815, %v811
        %v1032 = vpack.c.b16 %v820, %v816
        %v1033 = vpack.c.b16 %v821, %v817
        %v1034 = vpack.c.b16 %v822, %v818
        %v1035 = vpack.c.b16 %v823, %v819
        %v1036 = vpack.c.b16 %v828, %v824
        %v1037 = vpack.c.b16 %v829, %v825
        %v1038 = vpack.c.b16 %v830, %v826
        %v1039 = vpack.c.b16 %v831, %v827
        %v1040 = vpack.c.b16 %v836, %v832
        %v1041 = vpack.c.b16 %v837, %v833
        %v1042 = vpack.c.b16 %v838, %v834
        %v1043 = vpack.c.b16 %v839, %v835
        %v1044 = vpack.c.b16 %v844, %v840
        %v1045 = vpack.c.b16 %v845, %v841
        %v1046 = vpack.c.b16 %v846, %v842
        %v1047 = vpack.c.b16 %v847, %v843
        %v1048 = vpack.c.b16 %v852, %v848
        %v1049 = vpack.c.b16 %v853, %v849
        %v1050 = vpack.c.b16 %v854, %v850
        %v1051 = vpack.c.b16 %v855, %v851
        %v1052 = vpack.c.b16 %v860, %v856
        %v1053 = vpack.c.b16 %v861, %v857
        %v1054 = vpack.c.b16 %v862, %v858
        %v1055 = vpack.c.b16 %v863, %v859
        %v1056 = vpack.c.b16 %v868, %v864
        %v1057 = vpack.c.b16 %v869, %v865
        %v1058 = vpack.c.b16 %v870, %v866
        %v1059 = vpack.c.b16 %v871, %v867
        %v1060 = vpack.c.b16 %v876, %v872
        %v1061 = vpack.c.b16 %v877, %v873
        %v1062 = vpack.c.b16 %v878, %v874
        %v1063 = vpack.c.b16 %v879, %v875
        %v1064 = vpack.c.b16 %v884, %v880
        %v1065 = vpack.c.b16 %v885, %v881
        %v1066 = vpack.c.b16 %v886, %v882
        %v1067 = vpack.c.b16 %v887, %v883
        %v1068 = vpack.c.b16 %v892, %v888
        %v1069 = vpack.c.b16 %v893, %v889
        %v1070 = vpack.c.b16 %v894, %v890
        %v1071 = vpack.c.b16 %v895, %v891
        %v1072 = vpack.c.b16 %v900, %v896
        %v1073 = vpack.c.b16 %v901, %v897
        %v1074 = vpack.c.b16 %v902, %v898
        %v1075 = vpack.c.b16 %v903, %v899
        %v1076 = vpack.c.b16 %v908, %v904
        %v1077 = vpack.c.b16 %v909, %v905
        %v1078 = vpack.c.b16 %v910, %v906
        %v1079 = vpack.c.b16 %v911, %v907
        %v1080 = vpack.c.b16 %v916, %v912
        %v1081 = vpack.c.b16 %v917, %v913
        %v1082 = vpack.c.b16 %v918, %v914
        %v1083 = vpack.c.b16 %v919, %v915
        %v1084 = vpack.c.b16 %v924, %v920
        %v1085 = vpack.c.b16 %v925, %v921
        %v1086 = vpack.c.b16 %v926, %v922
        %v1087 = vpack.c.b16 %v927, %v923
        %v1088 = vpack.c.b16 %v932, %v928
        %v1089 = vpack.c.b16 %v933, %v929
        %v1090 = vpack.c.b16 %v934, %v930
        %v1091 = vpack.c.b16 %v935, %v931
        %v1092 = vpack.c.b16 %v940, %v936
        %v1093 = vpack.c.b16 %v941, %v937
        %v1094 = vpack.c.b16 %v942, %v938
        %v1095 = vpack.c.b16 %v943, %v939
        %v1096 = vpack.c.b16 %v948, %v944
        %v1097 = vpack.c.b16 %v949, %v945
        %v1098 = vpack.c.b16 %v950, %v946
        %v1099 = vpack.c.b16 %v951, %v947
        %v1100 = vpack.c.b16 %v956, %v952
        %v1101 = vpack.c.b16 %v957, %v953
        %v1102 = vpack.c.b16 %v958, %v954
        %v1103 = vpack.c.b16 %v959, %v955
        %v1104 = vpack.c.b16 %v964, %v960
        %v1105 = vpack.c.b16 %v965, %v961
        %v1106 = vpack.c.b16 %v966, %v962
        %v1107 = vpack.c.b16 %v967, %v963
        %v1108 = vpack.c.b16 %v972, %v968
        %v1109 = vpack.c.b16 %v973, %v969
        %v1110 = vpack.c.b16 %v974, %v970
        %v1111 = vpack.c.b16 %v975, %v971
        %v1112 = vpack.c.b16 %v980, %v976
        %v1113 = vpack.c.b16 %v981, %v977
        %v1114 = vpack.c.b16 %v982, %v978
        %v1115 = vpack.c.b16 %v983, %v979
        %v1116 = vpack.c.b16 %v988, %v984
        %v1117 = vpack.c.b16 %v989, %v985
        %v1118 = vpack.c.b16 %v990, %v986
        %v1119 = vpack.c.b16 %v991, %v987
        %v1312 = vunpack.c.l.b16 %v352
        %v1313 = vunpack.c.l.b16 %v353
        %v1314 = vunpack.c.l.b16 %v354
        %v1315 = vunpack.c.l.b16 %v355
        %v1316 = vunpack.c.l.b16 %v356
        %v1317 = vunpack.c.l.b16 %v357
        %v1318 = vunpack.c.l.b16 %v358
        %v1319 = vunpack.c.l.b16 %v359
        %v1320 = vunpack.c.l.b16 %v360
        %v1321 = vunpack.c.l.b16 %v361
        %v1322 = vunpack.c.l.b16 %v362
        %v1323 = vunpack.c.l.b16 %v363
        %v1324 = vunpack.c.l.b16 %v364
        %v1325 = vunpack.c.l.b16 %v365
        %v1326 = vunpack.c.l.b16 %v366
        %v1327 = vunpack.c.l.b16 %v367
        %v1328 = vunpack.c.l.b16 %v368
        %v1329 = vunpack.c.l.b16 %v369
        %v1330 = vunpack.c.l.b16 %v370
        %v1331 = vunpack.c.l.b16 %v371
        %v1332 = vunpack.c.l.b16 %v372
        %v1333 = vunpack.c.l.b16 %v373
        %v1334 = vunpack.c.l.b16 %v374
        %v1335 = vunpack.c.l.b16 %v375
        %v1336 = vunpack.c.l.b16 %v376
        %v1337 = vunpack.c.l.b16 %v377
        %v1338 = vunpack.c.l.b16 %v378
        %v1339 = vunpack.c.l.b16 %v379
        %v1340 = vunpack.c.l.b16 %v380
        %v1341 = vunpack.c.l.b16 %v381
        %v1342 = vunpack.c.l.b16 %v382
        %v1343 = vunpack.c.l.b16 %v383
        %v1344 = vunpack.c.l.b16 %v384
        %v1345 = vunpack.c.l.b16 %v385
        %v1346 = vunpack.c.l.b16 %v386
        %v1347 = vunpack.c.l.b16 %v387
        %v1348 = vunpack.c.l.b16 %v388
        %v1349 = vunpack.c.l.b16 %v389
        %v1350 = vunpack.c.l.b16 %v390
        %v1351 = vunpack.c.l.b16 %v391
        %v1352 = vunpack.c.l.b16 %v392
        %v1353 = vunpack.c.l.b16 %v393
        %v1354 = vunpack.c.l.b16 %v394
        %v1355 = vunpack.c.l.b16 %v395
        %v1356 = vunpack.c.l.b16 %v396
        %v1357 = vunpack.c.l.b16 %v397
        %v1358 = vunpack.c.l.b16 %v398
        %v1359 = vunpack.c.l.b16 %v399
        %v1360 = vunpack.c.l.b16 %v400
        %v1361 = vunpack.c.l.b16 %v401
        %v1362 = vunpack.c.l.b16 %v402
        %v1363 = vunpack.c.l.b16 %v403
        %v1364 = vunpack.c.l.b16 %v404
        %v1365 = vunpack.c.l.b16 %v405
        %v1366 = vunpack.c.l.b16 %v406
        %v1367 = vunpack.c.l.b16 %v407
        %v1368 = vunpack.c.l.b16 %v408
        %v1369 = vunpack.c.l.b16 %v409
        %v1370 = vunpack.c.l.b16 %v410
        %v1371 = vunpack.c.l.b16 %v411
        %v1372 = vunpack.c.l.b16 %v412
        %v1373 = vunpack.c.l.b16 %v413
        %v1374 = vunpack.c.l.b16 %v414
        %v1375 = vunpack.c.l.b16 %v415
        %v1376 = vpack.c.b16 %v1313, %v1312
        %v1377 = vpack.c.b16 %v1315, %v1314
        %v1378 = vpack.c.b16 %v1317, %v1316
        %v1379 = vpack.c.b16 %v1319, %v1318
        %v1380 = vpack.c.b16 %v1321, %v1320
        %v1381 = vpack.c.b16 %v1323, %v1322
        %v1382 = vpack.c.b16 %v1325, %v1324
        %v1383 = vpack.c.b16 %v1327, %v1326
        %v1384 = vpack.c.b16 %v1329, %v1328
        %v1385 = vpack.c.b16 %v1331, %v1330
        %v1386 = vpack.c.b16 %v1333, %v1332
        %v1387 = vpack.c.b16 %v1335, %v1334
        %v1388 = vpack.c.b16 %v1337, %v1336
        %v1389 = vpack.c.b16 %v1339, %v1338
        %v1390 = vpack.c.b16 %v1341, %v1340
        %v1391 = vpack.c.b16 %v1343, %v1342
        %v1392 = vpack.c.b16 %v1345, %v1344
        %v1393 = vpack.c.b16 %v1347, %v1346
        %v1394 = vpack.c.b16 %v1349, %v1348
        %v1395 = vpack.c.b16 %v1351, %v1350
        %v1396 = vpack.c.b16 %v1353, %v1352
        %v1397 = vpack.c.b16 %v1355, %v1354
        %v1398 = vpack.c.b16 %v1357, %v1356
        %v1399 = vpack.c.b16 %v1359, %v1358
        %v1400 = vpack.c.b16 %v1361, %v1360
        %v1401 = vpack.c.b16 %v1363, %v1362
        %v1402 = vpack.c.b16 %v1365, %v1364
        %v1403 = vpack.c.b16 %v1367, %v1366
        %v1404 = vpack.c.b16 %v1369, %v1368
        %v1405 = vpack.c.b16 %v1371, %v1370
        %v1406 = vpack.c.b16 %v1373, %v1372
        %v1407 = vpack.c.b16 %v1375, %v1374
        %1440 = vmatprep.subr.bf16.mxu0 0
        %1441 = vmatpush1.bf16.msra.mxu0 %v1376
        %1442 = vmatprep.subr.bf16.mxu0 0
        %1443 = vmatpush1.bf16.msra.mxu0 %v1377
        %1444 = vmatprep.subr.bf16.mxu0 0
        %1445 = vmatpush1.bf16.msra.mxu0 %v1378
        %1446 = vmatprep.subr.bf16.mxu0 0
        %1447 = vmatpush1.bf16.msra.mxu0 %v1379
        %1448 = vmatprep.subr.bf16.mxu0 0
        %1449 = vmatpush1.bf16.msra.mxu0 %v1380
        %1450 = vmatprep.subr.bf16.mxu0 0
        %1451 = vmatpush1.bf16.msra.mxu0 %v1381
        %1452 = vmatprep.subr.bf16.mxu0 0
        %1453 = vmatpush1.bf16.msra.mxu0 %v1382
        %1454 = vmatprep.subr.bf16.mxu0 0
        %1455 = vmatpush1.bf16.msra.mxu0 %v1383
        %1456 = vmatprep.subr.bf16.mxu0 0
        %1457 = vmatpush1.bf16.msra.mxu0 %v1384
        %1458 = vmatprep.subr.bf16.mxu0 0
        %1459 = vmatpush1.bf16.msra.mxu0 %v1385
        %1460 = vmatprep.subr.bf16.mxu0 0
        %1461 = vmatpush1.bf16.msra.mxu0 %v1386
        %1462 = vmatprep.subr.bf16.mxu0 0
        %1463 = vmatpush1.bf16.msra.mxu0 %v1387
        %1464 = vmatprep.subr.bf16.mxu0 0
        %1465 = vmatpush1.bf16.msra.mxu0 %v1388
        %1466 = vmatprep.subr.bf16.mxu0 0
        %1467 = vmatpush1.bf16.msra.mxu0 %v1389
        %1468 = vmatprep.subr.bf16.mxu0 0
        %1469 = vmatpush1.bf16.msra.mxu0 %v1390
        %1470 = vmatprep.subr.bf16.mxu0 0
        %1471 = vmatpush1.bf16.msra.mxu0 %v1391
        %1472 = vmatprep.mubr.bf16.mxu0 %v993
        %1473 = vmatmul.mubr.bf16.gmra.mrb[0].mxu0 %v992
        %v1474 = vpop.f32.mrb[0].mxu0
        %v1475 = vadd.f32 0.0, %v1474
        %v1476 = vpop.f32.mrb[0].mxu0
        %v1477 = vpop.f32.mrb[0].mxu0
        %v1478 = vadd.f32 0.0, %v1477
        %v1479 = vpop.f32.mrb[0].mxu0
        %1480 = vmatprep.mubr.bf16.mxu0 %v997
        %1481 = vmatmul.mubr.bf16.gmra.mrb[0].mxu0 %v996
        %v1482 = vpop.f32.mrb[0].mxu0
        %v1483 = vadd.f32 0.0, %v1482
        %v1484 = vpop.f32.mrb[0].mxu0
        %v1485 = vpop.f32.mrb[0].mxu0
        %v1486 = vadd.f32 0.0, %v1485
        %v1487 = vpop.f32.mrb[0].mxu0
        %1488 = vmatprep.mubr.bf16.mxu0 %v1001
        %1489 = vmatmul.mubr.bf16.gmra.mrb[0].mxu0 %v1000
        %v1490 = vpop.f32.mrb[0].mxu0
        %v1491 = vadd.f32 0.0, %v1490
        %v1492 = vpop.f32.mrb[0].mxu0
        %v1493 = vpop.f32.mrb[0].mxu0
        %v1494 = vadd.f32 0.0, %v1493
        %v1495 = vpop.f32.mrb[0].mxu0
        %1496 = vmatprep.mubr.bf16.mxu0 %v1005
        %1497 = vmatmul.mubr.bf16.gmra.mrb[0].mxu0 %v1004
        %v1498 = vpop.f32.mrb[0].mxu0
        %v1499 = vadd.f32 0.0, %v1498
        %v1500 = vpop.f32.mrb[0].mxu0
        %v1501 = vpop.f32.mrb[0].mxu0
        %v1502 = vadd.f32 0.0, %v1501
        %v1503 = vpop.f32.mrb[0].mxu0
        %1504 = vmatprep.mubr.bf16.mxu0 %v1009
        %1505 = vmatmul.mubr.bf16.gmra.mrb[0].mxu0 %v1008
        %v1506 = vpop.f32.mrb[0].mxu0
        %v1507 = vadd.f32 0.0, %v1506
        %v1508 = vpop.f32.mrb[0].mxu0
        %v1509 = vpop.f32.mrb[0].mxu0
        %v1510 = vadd.f32 0.0, %v1509
        %v1511 = vpop.f32.mrb[0].mxu0
        %1512 = vmatprep.mubr.bf16.mxu0 %v1013
        %1513 = vmatmul.mubr.bf16.gmra.mrb[0].mxu0 %v1012
        %v1514 = vpop.f32.mrb[0].mxu0
        %v1515 = vadd.f32 0.0, %v1514
        %v1516 = vpop.f32.mrb[0].mxu0
        %v1517 = vpop.f32.mrb[0].mxu0
        %v1518 = vadd.f32 0.0, %v1517
        %v1519 = vpop.f32.mrb[0].mxu0
        %1520 = vmatprep.mubr.bf16.mxu0 %v1017
        %1521 = vmatmul.mubr.bf16.gmra.mrb[0].mxu0 %v1016
        %v1522 = vpop.f32.mrb[0].mxu0
        %v1523 = vadd.f32 0.0, %v1522
        %v1524 = vpop.f32.mrb[0].mxu0
        %v1525 = vpop.f32.mrb[0].mxu0
        %v1526 = vadd.f32 0.0, %v1525
        %v1527 = vpop.f32.mrb[0].mxu0
        %1528 = vmatprep.mubr.bf16.mxu0 %v1021
        %1529 = vmatmul.mubr.bf16.gmra.mrb[0].mxu0 %v1020
        %v1530 = vpop.f32.mrb[0].mxu0
        %v1531 = vadd.f32 0.0, %v1530
        %v1532 = vpop.f32.mrb[0].mxu0
        %v1533 = vpop.f32.mrb[0].mxu0
        %v1534 = vadd.f32 0.0, %v1533
        %v1535 = vpop.f32.mrb[0].mxu0
        %1536 = vmatprep.mubr.bf16.mxu0 %v1025
        %1537 = vmatmul.mubr.bf16.gmra.mrb[0].mxu0 %v1024
        %v1538 = vpop.f32.mrb[0].mxu0
        %v1539 = vadd.f32 0.0, %v1538
        %v1540 = vpop.f32.mrb[0].mxu0
        %v1541 = vpop.f32.mrb[0].mxu0
        %v1542 = vadd.f32 0.0, %v1541
        %v1543 = vpop.f32.mrb[0].mxu0
        %1544 = vmatprep.mubr.bf16.mxu0 %v1029
        %1545 = vmatmul.mubr.bf16.gmra.mrb[0].mxu0 %v1028
        %v1546 = vpop.f32.mrb[0].mxu0
        %v1547 = vadd.f32 0.0, %v1546
        %v1548 = vpop.f32.mrb[0].mxu0
        %v1549 = vpop.f32.mrb[0].mxu0
        %v1550 = vadd.f32 0.0, %v1549
        %v1551 = vpop.f32.mrb[0].mxu0
        %1552 = vmatprep.mubr.bf16.mxu0 %v1033
        %1553 = vmatmul.mubr.bf16.gmra.mrb[0].mxu0 %v1032
        %v1554 = vpop.f32.mrb[0].mxu0
        %v1555 = vadd.f32 0.0, %v1554
        %v1556 = vpop.f32.mrb[0].mxu0
        %v1557 = vpop.f32.mrb[0].mxu0
        %v1558 = vadd.f32 0.0, %v1557
        %v1559 = vpop.f32.mrb[0].mxu0
        %1560 = vmatprep.mubr.bf16.mxu0 %v1037
        %1561 = vmatmul.mubr.bf16.gmra.mrb[0].mxu0 %v1036
        %v1562 = vpop.f32.mrb[0].mxu0
        %v1563 = vadd.f32 0.0, %v1562
        %v1564 = vpop.f32.mrb[0].mxu0
        %v1565 = vpop.f32.mrb[0].mxu0
        %v1566 = vadd.f32 0.0, %v1565
        %v1567 = vpop.f32.mrb[0].mxu0
        %1568 = vmatprep.mubr.bf16.mxu0 %v1041
        %1569 = vmatmul.mubr.bf16.gmra.mrb[0].mxu0 %v1040
        %v1570 = vpop.f32.mrb[0].mxu0
        %v1571 = vadd.f32 0.0, %v1570
        %v1572 = vpop.f32.mrb[0].mxu0
        %v1573 = vpop.f32.mrb[0].mxu0
        %v1574 = vadd.f32 0.0, %v1573
        %v1575 = vpop.f32.mrb[0].mxu0
        %1576 = vmatprep.mubr.bf16.mxu0 %v1045
        %1577 = vmatmul.mubr.bf16.gmra.mrb[0].mxu0 %v1044
        %v1578 = vpop.f32.mrb[0].mxu0
        %v1579 = vadd.f32 0.0, %v1578
        %v1580 = vpop.f32.mrb[0].mxu0
        %v1581 = vpop.f32.mrb[0].mxu0
        %v1582 = vadd.f32 0.0, %v1581
        %v1583 = vpop.f32.mrb[0].mxu0
        %1584 = vmatprep.mubr.bf16.mxu0 %v1049
        %1585 = vmatmul.mubr.bf16.gmra.mrb[0].mxu0 %v1048
        %v1586 = vpop.f32.mrb[0].mxu0
        %v1587 = vadd.f32 0.0, %v1586
        %v1588 = vpop.f32.mrb[0].mxu0
        %v1589 = vpop.f32.mrb[0].mxu0
        %v1590 = vadd.f32 0.0, %v1589
        %v1591 = vpop.f32.mrb[0].mxu0
        %1592 = vmatprep.mubr.bf16.mxu0 %v1053
        %1593 = vmatmul.mubr.bf16.gmra.mrb[0].mxu0 %v1052
        %v1594 = vpop.f32.mrb[0].mxu0
        %v1595 = vadd.f32 0.0, %v1594
        %v1596 = vpop.f32.mrb[0].mxu0
        %v1597 = vpop.f32.mrb[0].mxu0
        %v1598 = vadd.f32 0.0, %v1597
        %v1599 = vpop.f32.mrb[0].mxu0
        %1600 = vmatprep.mubr.bf16.mxu0 %v1057
        %1601 = vmatmul.mubr.bf16.gmra.mrb[0].mxu0 %v1056
        %v1602 = vpop.f32.mrb[0].mxu0
        %v1603 = vadd.f32 0.0, %v1602
        %v1604 = vpop.f32.mrb[0].mxu0
        %v1605 = vpop.f32.mrb[0].mxu0
        %v1606 = vadd.f32 0.0, %v1605
        %v1607 = vpop.f32.mrb[0].mxu0
        %1608 = vmatprep.mubr.bf16.mxu0 %v1061
        %1609 = vmatmul.mubr.bf16.gmra.mrb[0].mxu0 %v1060
        %v1610 = vpop.f32.mrb[0].mxu0
        %v1611 = vadd.f32 0.0, %v1610
        %v1612 = vpop.f32.mrb[0].mxu0
        %v1613 = vpop.f32.mrb[0].mxu0
        %v1614 = vadd.f32 0.0, %v1613
        %v1615 = vpop.f32.mrb[0].mxu0
        %1616 = vmatprep.mubr.bf16.mxu0 %v1065
        %1617 = vmatmul.mubr.bf16.gmra.mrb[0].mxu0 %v1064
        %v1618 = vpop.f32.mrb[0].mxu0
        %v1619 = vadd.f32 0.0, %v1618
        %v1620 = vpop.f32.mrb[0].mxu0
        %v1621 = vpop.f32.mrb[0].mxu0
        %v1622 = vadd.f32 0.0, %v1621
        %v1623 = vpop.f32.mrb[0].mxu0
        %1624 = vmatprep.mubr.bf16.mxu0 %v1069
        %1625 = vmatmul.mubr.bf16.gmra.mrb[0].mxu0 %v1068
        %v1626 = vpop.f32.mrb[0].mxu0
        %v1627 = vadd.f32 0.0, %v1626
        %v1628 = vpop.f32.mrb[0].mxu0
        %v1629 = vpop.f32.mrb[0].mxu0
        %v1630 = vadd.f32 0.0, %v1629
        %v1631 = vpop.f32.mrb[0].mxu0
        %1632 = vmatprep.mubr.bf16.mxu0 %v1073
        %1633 = vmatmul.mubr.bf16.gmra.mrb[0].mxu0 %v1072
        %v1634 = vpop.f32.mrb[0].mxu0
        %v1635 = vadd.f32 0.0, %v1634
        %v1636 = vpop.f32.mrb[0].mxu0
        %v1637 = vpop.f32.mrb[0].mxu0
        %v1638 = vadd.f32 0.0, %v1637
        %v1639 = vpop.f32.mrb[0].mxu0
        %1640 = vmatprep.mubr.bf16.mxu0 %v1077
        %1641 = vmatmul.mubr.bf16.gmra.mrb[0].mxu0 %v1076
        %v1642 = vpop.f32.mrb[0].mxu0
        %v1643 = vadd.f32 0.0, %v1642
        %v1644 = vpop.f32.mrb[0].mxu0
        %v1645 = vpop.f32.mrb[0].mxu0
        %v1646 = vadd.f32 0.0, %v1645
        %v1647 = vpop.f32.mrb[0].mxu0
        %1648 = vmatprep.mubr.bf16.mxu0 %v1081
        %1649 = vmatmul.mubr.bf16.gmra.mrb[0].mxu0 %v1080
        %v1650 = vpop.f32.mrb[0].mxu0
        %v1651 = vadd.f32 0.0, %v1650
        %v1652 = vpop.f32.mrb[0].mxu0
        %v1653 = vpop.f32.mrb[0].mxu0
        %v1654 = vadd.f32 0.0, %v1653
        %v1655 = vpop.f32.mrb[0].mxu0
        %1656 = vmatprep.mubr.bf16.mxu0 %v1085
        %1657 = vmatmul.mubr.bf16.gmra.mrb[0].mxu0 %v1084
        %v1658 = vpop.f32.mrb[0].mxu0
        %v1659 = vadd.f32 0.0, %v1658
        %v1660 = vpop.f32.mrb[0].mxu0
        %v1661 = vpop.f32.mrb[0].mxu0
        %v1662 = vadd.f32 0.0, %v1661
        %v1663 = vpop.f32.mrb[0].mxu0
        %1664 = vmatprep.mubr.bf16.mxu0 %v1089
        %1665 = vmatmul.mubr.bf16.gmra.mrb[0].mxu0 %v1088
        %v1666 = vpop.f32.mrb[0].mxu0
        %v1667 = vadd.f32 0.0, %v1666
        %v1668 = vpop.f32.mrb[0].mxu0
        %v1669 = vpop.f32.mrb[0].mxu0
        %v1670 = vadd.f32 0.0, %v1669
        %v1671 = vpop.f32.mrb[0].mxu0
        %1672 = vmatprep.mubr.bf16.mxu0 %v1093
        %1673 = vmatmul.mubr.bf16.gmra.mrb[0].mxu0 %v1092
        %v1674 = vpop.f32.mrb[0].mxu0
        %v1675 = vadd.f32 0.0, %v1674
        %v1676 = vpop.f32.mrb[0].mxu0
        %v1677 = vpop.f32.mrb[0].mxu0
        %v1678 = vadd.f32 0.0, %v1677
        %v1679 = vpop.f32.mrb[0].mxu0
        %1680 = vmatprep.mubr.bf16.mxu0 %v1097
        %1681 = vmatmul.mubr.bf16.gmra.mrb[0].mxu0 %v1096
        %v1682 = vpop.f32.mrb[0].mxu0
        %v1683 = vadd.f32 0.0, %v1682
        %v1684 = vpop.f32.mrb[0].mxu0
        %v1685 = vpop.f32.mrb[0].mxu0
        %v1686 = vadd.f32 0.0, %v1685
        %v1687 = vpop.f32.mrb[0].mxu0
        %1688 = vmatprep.mubr.bf16.mxu0 %v1101
        %1689 = vmatmul.mubr.bf16.gmra.mrb[0].mxu0 %v1100
        %v1690 = vpop.f32.mrb[0].mxu0
        %v1691 = vadd.f32 0.0, %v1690
        %v1692 = vpop.f32.mrb[0].mxu0
        %v1693 = vpop.f32.mrb[0].mxu0
        %v1694 = vadd.f32 0.0, %v1693
        %v1695 = vpop.f32.mrb[0].mxu0
        %1696 = vmatprep.mubr.bf16.mxu0 %v1105
        %1697 = vmatmul.mubr.bf16.gmra.mrb[0].mxu0 %v1104
        %v1698 = vpop.f32.mrb[0].mxu0
        %v1699 = vadd.f32 0.0, %v1698
        %v1700 = vpop.f32.mrb[0].mxu0
        %v1701 = vpop.f32.mrb[0].mxu0
        %v1702 = vadd.f32 0.0, %v1701
        %v1703 = vpop.f32.mrb[0].mxu0
        %1704 = vmatprep.mubr.bf16.mxu0 %v1109
        %1705 = vmatmul.mubr.bf16.gmra.mrb[0].mxu0 %v1108
        %v1706 = vpop.f32.mrb[0].mxu0
        %v1707 = vadd.f32 0.0, %v1706
        %v1708 = vpop.f32.mrb[0].mxu0
        %v1709 = vpop.f32.mrb[0].mxu0
        %v1710 = vadd.f32 0.0, %v1709
        %v1711 = vpop.f32.mrb[0].mxu0
        %1712 = vmatprep.mubr.bf16.mxu0 %v1113
        %1713 = vmatmul.mubr.bf16.gmra.mrb[0].mxu0 %v1112
        %v1714 = vpop.f32.mrb[0].mxu0
        %v1715 = vadd.f32 0.0, %v1714
        %v1716 = vpop.f32.mrb[0].mxu0
        %v1717 = vpop.f32.mrb[0].mxu0
        %v1718 = vadd.f32 0.0, %v1717
        %v1719 = vpop.f32.mrb[0].mxu0
        %1720 = vmatprep.mubr.bf16.mxu0 %v1117
        %1721 = vmatmul.mubr.bf16.gmra.mrb[0].mxu0 %v1116
        %v1722 = vpop.f32.mrb[0].mxu0
        %v1723 = vadd.f32 0.0, %v1722
        %v1724 = vpop.f32.mrb[0].mxu0
        %v1725 = vpop.f32.mrb[0].mxu0
        %v1726 = vadd.f32 0.0, %v1725
        %v1727 = vpop.f32.mrb[0].mxu0
        %1728 = vdwg.mxu0
        %1729 = vmatprep.subr.bf16.mxu0 0
        %1730 = vmatpush1.bf16.msra.mxu0 %v1392
        %1731 = vmatprep.subr.bf16.mxu0 0
        %1732 = vmatpush1.bf16.msra.mxu0 %v1393
        %1733 = vmatprep.subr.bf16.mxu0 0
        %1734 = vmatpush1.bf16.msra.mxu0 %v1394
        %1735 = vmatprep.subr.bf16.mxu0 0
        %1736 = vmatpush1.bf16.msra.mxu0 %v1395
        %1737 = vmatprep.subr.bf16.mxu0 0
        %1738 = vmatpush1.bf16.msra.mxu0 %v1396
        %1739 = vmatprep.subr.bf16.mxu0 0
        %1740 = vmatpush1.bf16.msra.mxu0 %v1397
        %1741 = vmatprep.subr.bf16.mxu0 0
        %1742 = vmatpush1.bf16.msra.mxu0 %v1398
        %1743 = vmatprep.subr.bf16.mxu0 0
        %1744 = vmatpush1.bf16.msra.mxu0 %v1399
        %1745 = vmatprep.subr.bf16.mxu0 0
        %1746 = vmatpush1.bf16.msra.mxu0 %v1400
        %1747 = vmatprep.subr.bf16.mxu0 0
        %1748 = vmatpush1.bf16.msra.mxu0 %v1401
        %1749 = vmatprep.subr.bf16.mxu0 0
        %1750 = vmatpush1.bf16.msra.mxu0 %v1402
        %1751 = vmatprep.subr.bf16.mxu0 0
        %1752 = vmatpush1.bf16.msra.mxu0 %v1403
        %1753 = vmatprep.subr.bf16.mxu0 0
        %1754 = vmatpush1.bf16.msra.mxu0 %v1404
        %1755 = vmatprep.subr.bf16.mxu0 0
        %1756 = vmatpush1.bf16.msra.mxu0 %v1405
        %1757 = vmatprep.subr.bf16.mxu0 0
        %1758 = vmatpush1.bf16.msra.mxu0 %v1406
        %1759 = vmatprep.subr.bf16.mxu0 0
        %1760 = vmatpush1.bf16.msra.mxu0 %v1407
        %1761 = vmatprep.mubr.bf16.mxu0 %v995
        %1762 = vmatmul.mubr.bf16.gmra.mrb[0].mxu0 %v994
        %v1763 = vpop.f32.mrb[0].mxu0
        %v1764 = vadd.f32 %v1475, %v1763
        %v1765 = vpop.f32.mrb[0].mxu0
        %v1766 = vpop.f32.mrb[0].mxu0
        %v1767 = vadd.f32 %v1478, %v1766
        %v1768 = vpop.f32.mrb[0].mxu0
        %1769 = vmatprep.mubr.bf16.mxu0 %v999
        %1770 = vmatmul.mubr.bf16.gmra.mrb[0].mxu0 %v998
        %v1771 = vpop.f32.mrb[0].mxu0
        %v1772 = vadd.f32 %v1483, %v1771
        %v1773 = vpop.f32.mrb[0].mxu0
        %v1774 = vpop.f32.mrb[0].mxu0
        %v1775 = vadd.f32 %v1486, %v1774
        %v1776 = vpop.f32.mrb[0].mxu0
        %1777 = vmatprep.mubr.bf16.mxu0 %v1003
        %1778 = vmatmul.mubr.bf16.gmra.mrb[0].mxu0 %v1002
        %v1779 = vpop.f32.mrb[0].mxu0
        %v1780 = vadd.f32 %v1491, %v1779
        %v1781 = vpop.f32.mrb[0].mxu0
        %v1782 = vpop.f32.mrb[0].mxu0
        %v1783 = vadd.f32 %v1494, %v1782
        %v1784 = vpop.f32.mrb[0].mxu0
        %1785 = vmatprep.mubr.bf16.mxu0 %v1007
        %1786 = vmatmul.mubr.bf16.gmra.mrb[0].mxu0 %v1006
        %v1787 = vpop.f32.mrb[0].mxu0
        %v1788 = vadd.f32 %v1499, %v1787
        %v1789 = vpop.f32.mrb[0].mxu0
        %v1790 = vpop.f32.mrb[0].mxu0
        %v1791 = vadd.f32 %v1502, %v1790
        %v1792 = vpop.f32.mrb[0].mxu0
        %1793 = vmatprep.mubr.bf16.mxu0 %v1011
        %1794 = vmatmul.mubr.bf16.gmra.mrb[0].mxu0 %v1010
        %v1795 = vpop.f32.mrb[0].mxu0
        %v1796 = vadd.f32 %v1507, %v1795
        %v1797 = vpop.f32.mrb[0].mxu0
        %v1798 = vpop.f32.mrb[0].mxu0
        %v1799 = vadd.f32 %v1510, %v1798
        %v1800 = vpop.f32.mrb[0].mxu0
        %1801 = vmatprep.mubr.bf16.mxu0 %v1015
        %1802 = vmatmul.mubr.bf16.gmra.mrb[0].mxu0 %v1014
        %v1803 = vpop.f32.mrb[0].mxu0
        %v1804 = vadd.f32 %v1515, %v1803
        %v1805 = vpop.f32.mrb[0].mxu0
        %v1806 = vpop.f32.mrb[0].mxu0
        %v1807 = vadd.f32 %v1518, %v1806
        %v1808 = vpop.f32.mrb[0].mxu0
        %1809 = vmatprep.mubr.bf16.mxu0 %v1019
        %1810 = vmatmul.mubr.bf16.gmra.mrb[0].mxu0 %v1018
        %v1811 = vpop.f32.mrb[0].mxu0
        %v1812 = vadd.f32 %v1523, %v1811
        %v1813 = vpop.f32.mrb[0].mxu0
        %v1814 = vpop.f32.mrb[0].mxu0
        %v1815 = vadd.f32 %v1526, %v1814
        %v1816 = vpop.f32.mrb[0].mxu0
        %1817 = vmatprep.mubr.bf16.mxu0 %v1023
        %1818 = vmatmul.mubr.bf16.gmra.mrb[0].mxu0 %v1022
        %v1819 = vpop.f32.mrb[0].mxu0
        %v1820 = vadd.f32 %v1531, %v1819
        %v1821 = vpop.f32.mrb[0].mxu0
        %v1822 = vpop.f32.mrb[0].mxu0
        %v1823 = vadd.f32 %v1534, %v1822
        %v1824 = vpop.f32.mrb[0].mxu0
        %1825 = vmatprep.mubr.bf16.mxu0 %v1027
        %1826 = vmatmul.mubr.bf16.gmra.mrb[0].mxu0 %v1026
        %v1827 = vpop.f32.mrb[0].mxu0
        %v1828 = vadd.f32 %v1539, %v1827
        %v1829 = vpop.f32.mrb[0].mxu0
        %v1830 = vpop.f32.mrb[0].mxu0
        %v1831 = vadd.f32 %v1542, %v1830
        %v1832 = vpop.f32.mrb[0].mxu0
        %1833 = vmatprep.mubr.bf16.mxu0 %v1031
        %1834 = vmatmul.mubr.bf16.gmra.mrb[0].mxu0 %v1030
        %v1835 = vpop.f32.mrb[0].mxu0
        %v1836 = vadd.f32 %v1547, %v1835
        %v1837 = vpop.f32.mrb[0].mxu0
        %v1838 = vpop.f32.mrb[0].mxu0
        %v1839 = vadd.f32 %v1550, %v1838
        %v1840 = vpop.f32.mrb[0].mxu0
        %1841 = vmatprep.mubr.bf16.mxu0 %v1035
        %1842 = vmatmul.mubr.bf16.gmra.mrb[0].mxu0 %v1034
        %v1843 = vpop.f32.mrb[0].mxu0
        %v1844 = vadd.f32 %v1555, %v1843
        %v1845 = vpop.f32.mrb[0].mxu0
        %v1846 = vpop.f32.mrb[0].mxu0
        %v1847 = vadd.f32 %v1558, %v1846
        %v1848 = vpop.f32.mrb[0].mxu0
        %1849 = vmatprep.mubr.bf16.mxu0 %v1039
        %1850 = vmatmul.mubr.bf16.gmra.mrb[0].mxu0 %v1038
        %v1851 = vpop.f32.mrb[0].mxu0
        %v1852 = vadd.f32 %v1563, %v1851
        %v1853 = vpop.f32.mrb[0].mxu0
        %v1854 = vpop.f32.mrb[0].mxu0
        %v1855 = vadd.f32 %v1566, %v1854
        %v1856 = vpop.f32.mrb[0].mxu0
        %1857 = vmatprep.mubr.bf16.mxu0 %v1043
        %1858 = vmatmul.mubr.bf16.gmra.mrb[0].mxu0 %v1042
        %v1859 = vpop.f32.mrb[0].mxu0
        %v1860 = vadd.f32 %v1571, %v1859
        %v1861 = vpop.f32.mrb[0].mxu0
        %v1862 = vpop.f32.mrb[0].mxu0
        %v1863 = vadd.f32 %v1574, %v1862
        %v1864 = vpop.f32.mrb[0].mxu0
        %1865 = vmatprep.mubr.bf16.mxu0 %v1047
        %1866 = vmatmul.mubr.bf16.gmra.mrb[0].mxu0 %v1046
        %v1867 = vpop.f32.mrb[0].mxu0
        %v1868 = vadd.f32 %v1579, %v1867
        %v1869 = vpop.f32.mrb[0].mxu0
        %v1870 = vpop.f32.mrb[0].mxu0
        %v1871 = vadd.f32 %v1582, %v1870
        %v1872 = vpop.f32.mrb[0].mxu0
        %1873 = vmatprep.mubr.bf16.mxu0 %v1051
        %1874 = vmatmul.mubr.bf16.gmra.mrb[0].mxu0 %v1050
        %v1875 = vpop.f32.mrb[0].mxu0
        %v1876 = vadd.f32 %v1587, %v1875
        %v1877 = vpop.f32.mrb[0].mxu0
        %v1878 = vpop.f32.mrb[0].mxu0
        %v1879 = vadd.f32 %v1590, %v1878
        %v1880 = vpop.f32.mrb[0].mxu0
        %1881 = vmatprep.mubr.bf16.mxu0 %v1055
        %1882 = vmatmul.mubr.bf16.gmra.mrb[0].mxu0 %v1054
        %v1883 = vpop.f32.mrb[0].mxu0
        %v1884 = vadd.f32 %v1595, %v1883
        %v1885 = vpop.f32.mrb[0].mxu0
        %v1886 = vpop.f32.mrb[0].mxu0
        %v1887 = vadd.f32 %v1598, %v1886
        %v1888 = vpop.f32.mrb[0].mxu0
        %1889 = vmatprep.mubr.bf16.mxu0 %v1059
        %1890 = vmatmul.mubr.bf16.gmra.mrb[0].mxu0 %v1058
        %v1891 = vpop.f32.mrb[0].mxu0
        %v1892 = vadd.f32 %v1603, %v1891
        %v1893 = vpop.f32.mrb[0].mxu0
        %v1894 = vpop.f32.mrb[0].mxu0
        %v1895 = vadd.f32 %v1606, %v1894
        %v1896 = vpop.f32.mrb[0].mxu0
        %1897 = vmatprep.mubr.bf16.mxu0 %v1063
        %1898 = vmatmul.mubr.bf16.gmra.mrb[0].mxu0 %v1062
        %v1899 = vpop.f32.mrb[0].mxu0
        %v1900 = vadd.f32 %v1611, %v1899
        %v1901 = vpop.f32.mrb[0].mxu0
        %v1902 = vpop.f32.mrb[0].mxu0
        %v1903 = vadd.f32 %v1614, %v1902
        %v1904 = vpop.f32.mrb[0].mxu0
        %1905 = vmatprep.mubr.bf16.mxu0 %v1067
        %1906 = vmatmul.mubr.bf16.gmra.mrb[0].mxu0 %v1066
        %v1907 = vpop.f32.mrb[0].mxu0
        %v1908 = vadd.f32 %v1619, %v1907
        %v1909 = vpop.f32.mrb[0].mxu0
        %v1910 = vpop.f32.mrb[0].mxu0
        %v1911 = vadd.f32 %v1622, %v1910
        %v1912 = vpop.f32.mrb[0].mxu0
        %1913 = vmatprep.mubr.bf16.mxu0 %v1071
        %1914 = vmatmul.mubr.bf16.gmra.mrb[0].mxu0 %v1070
        %v1915 = vpop.f32.mrb[0].mxu0
        %v1916 = vadd.f32 %v1627, %v1915
        %v1917 = vpop.f32.mrb[0].mxu0
        %v1918 = vpop.f32.mrb[0].mxu0
        %v1919 = vadd.f32 %v1630, %v1918
        %v1920 = vpop.f32.mrb[0].mxu0
        %1921 = vmatprep.mubr.bf16.mxu0 %v1075
        %1922 = vmatmul.mubr.bf16.gmra.mrb[0].mxu0 %v1074
        %v1923 = vpop.f32.mrb[0].mxu0
        %v1924 = vadd.f32 %v1635, %v1923
        %v1925 = vpop.f32.mrb[0].mxu0
        %v1926 = vpop.f32.mrb[0].mxu0
        %v1927 = vadd.f32 %v1638, %v1926
        %v1928 = vpop.f32.mrb[0].mxu0
        %1929 = vmatprep.mubr.bf16.mxu0 %v1079
        %1930 = vmatmul.mubr.bf16.gmra.mrb[0].mxu0 %v1078
        %v1931 = vpop.f32.mrb[0].mxu0
        %v1932 = vadd.f32 %v1643, %v1931
        %v1933 = vpop.f32.mrb[0].mxu0
        %v1934 = vpop.f32.mrb[0].mxu0
        %v1935 = vadd.f32 %v1646, %v1934
        %v1936 = vpop.f32.mrb[0].mxu0
        %1937 = vmatprep.mubr.bf16.mxu0 %v1083
        %1938 = vmatmul.mubr.bf16.gmra.mrb[0].mxu0 %v1082
        %v1939 = vpop.f32.mrb[0].mxu0
        %v1940 = vadd.f32 %v1651, %v1939
        %v1941 = vpop.f32.mrb[0].mxu0
        %v1942 = vpop.f32.mrb[0].mxu0
        %v1943 = vadd.f32 %v1654, %v1942
        %v1944 = vpop.f32.mrb[0].mxu0
        %1945 = vmatprep.mubr.bf16.mxu0 %v1087
        %1946 = vmatmul.mubr.bf16.gmra.mrb[0].mxu0 %v1086
        %v1947 = vpop.f32.mrb[0].mxu0
        %v1948 = vadd.f32 %v1659, %v1947
        %v1949 = vpop.f32.mrb[0].mxu0
        %v1950 = vpop.f32.mrb[0].mxu0
        %v1951 = vadd.f32 %v1662, %v1950
        %v1952 = vpop.f32.mrb[0].mxu0
        %1953 = vmatprep.mubr.bf16.mxu0 %v1091
        %1954 = vmatmul.mubr.bf16.gmra.mrb[0].mxu0 %v1090
        %v1955 = vpop.f32.mrb[0].mxu0
        %v1956 = vadd.f32 %v1667, %v1955
        %v1957 = vpop.f32.mrb[0].mxu0
        %v1958 = vpop.f32.mrb[0].mxu0
        %v1959 = vadd.f32 %v1670, %v1958
        %v1960 = vpop.f32.mrb[0].mxu0
        %1961 = vmatprep.mubr.bf16.mxu0 %v1095
        %1962 = vmatmul.mubr.bf16.gmra.mrb[0].mxu0 %v1094
        %v1963 = vpop.f32.mrb[0].mxu0
        %v1964 = vadd.f32 %v1675, %v1963
        %v1965 = vpop.f32.mrb[0].mxu0
        %v1966 = vpop.f32.mrb[0].mxu0
        %v1967 = vadd.f32 %v1678, %v1966
        %v1968 = vpop.f32.mrb[0].mxu0
        %1969 = vmatprep.mubr.bf16.mxu0 %v1099
        %1970 = vmatmul.mubr.bf16.gmra.mrb[0].mxu0 %v1098
        %v1971 = vpop.f32.mrb[0].mxu0
        %v1972 = vadd.f32 %v1683, %v1971
        %v1973 = vpop.f32.mrb[0].mxu0
        %v1974 = vpop.f32.mrb[0].mxu0
        %v1975 = vadd.f32 %v1686, %v1974
        %v1976 = vpop.f32.mrb[0].mxu0
        %1977 = vmatprep.mubr.bf16.mxu0 %v1103
        %1978 = vmatmul.mubr.bf16.gmra.mrb[0].mxu0 %v1102
        %v1979 = vpop.f32.mrb[0].mxu0
        %v1980 = vadd.f32 %v1691, %v1979
        %v1981 = vpop.f32.mrb[0].mxu0
        %v1982 = vpop.f32.mrb[0].mxu0
        %v1983 = vadd.f32 %v1694, %v1982
        %v1984 = vpop.f32.mrb[0].mxu0
        %1985 = vmatprep.mubr.bf16.mxu0 %v1107
        %1986 = vmatmul.mubr.bf16.gmra.mrb[0].mxu0 %v1106
        %v1987 = vpop.f32.mrb[0].mxu0
        %v1988 = vadd.f32 %v1699, %v1987
        %v1989 = vpop.f32.mrb[0].mxu0
        %v1990 = vpop.f32.mrb[0].mxu0
        %v1991 = vadd.f32 %v1702, %v1990
        %v1992 = vpop.f32.mrb[0].mxu0
        %1993 = vmatprep.mubr.bf16.mxu0 %v1111
        %1994 = vmatmul.mubr.bf16.gmra.mrb[0].mxu0 %v1110
        %v1995 = vpop.f32.mrb[0].mxu0
        %v1996 = vadd.f32 %v1707, %v1995
        %v1997 = vpop.f32.mrb[0].mxu0
        %v1998 = vpop.f32.mrb[0].mxu0
        %v1999 = vadd.f32 %v1710, %v1998
        %v2000 = vpop.f32.mrb[0].mxu0
        %2001 = vmatprep.mubr.bf16.mxu0 %v1115
        %2002 = vmatmul.mubr.bf16.gmra.mrb[0].mxu0 %v1114
        %v2003 = vpop.f32.mrb[0].mxu0
        %v2004 = vadd.f32 %v1715, %v2003
        %v2005 = vpop.f32.mrb[0].mxu0
        %v2006 = vpop.f32.mrb[0].mxu0
        %v2007 = vadd.f32 %v1718, %v2006
        %v2008 = vpop.f32.mrb[0].mxu0
        %2009 = vmatprep.mubr.bf16.mxu0 %v1119
        %2010 = vmatmul.mubr.bf16.gmra.mrb[0].mxu0 %v1118
        %v2011 = vpop.f32.mrb[0].mxu0
        %v2012 = vadd.f32 %v1723, %v2011
        %v2013 = vpop.f32.mrb[0].mxu0
        %v2014 = vpop.f32.mrb[0].mxu0
        %v2015 = vadd.f32 %v1726, %v2014
        %v2016 = vpop.f32.mrb[0].mxu0
        %2017 = vdwg.mxu0
        %v2018 = vadd.f32 %v416, %v1764
        %v2019 = vadd.f32 %v417, %v1767
        %v2020 = vadd.f32 %v418, %v1772
        %v2021 = vadd.f32 %v419, %v1775
        %v2022 = vadd.f32 %v420, %v1780
        %v2023 = vadd.f32 %v421, %v1783
        %v2024 = vadd.f32 %v422, %v1788
        %v2025 = vadd.f32 %v423, %v1791
        %v2026 = vadd.f32 %v424, %v1796
        %v2027 = vadd.f32 %v425, %v1799
        %v2028 = vadd.f32 %v426, %v1804
        %v2029 = vadd.f32 %v427, %v1807
        %v2030 = vadd.f32 %v428, %v1812
        %v2031 = vadd.f32 %v429, %v1815
        %v2032 = vadd.f32 %v430, %v1820
        %v2033 = vadd.f32 %v431, %v1823
        %v2034 = vadd.f32 %v432, %v1828
        %v2035 = vadd.f32 %v433, %v1831
        %v2036 = vadd.f32 %v434, %v1836
        %v2037 = vadd.f32 %v435, %v1839
        %v2038 = vadd.f32 %v436, %v1844
        %v2039 = vadd.f32 %v437, %v1847
        %v2040 = vadd.f32 %v438, %v1852
        %v2041 = vadd.f32 %v439, %v1855
        %v2042 = vadd.f32 %v440, %v1860
        %v2043 = vadd.f32 %v441, %v1863
        %v2044 = vadd.f32 %v442, %v1868
        %v2045 = vadd.f32 %v443, %v1871
        %v2046 = vadd.f32 %v444, %v1876
        %v2047 = vadd.f32 %v445, %v1879
        %v2048 = vadd.f32 %v446, %v1884
        %v2049 = vadd.f32 %v447, %v1887
        %v2050 = vadd.f32 %v448, %v1892
        %v2051 = vadd.f32 %v449, %v1895
        %v2052 = vadd.f32 %v450, %v1900
        %v2053 = vadd.f32 %v451, %v1903
        %v2054 = vadd.f32 %v452, %v1908
        %v2055 = vadd.f32 %v453, %v1911
        %v2056 = vadd.f32 %v454, %v1916
        %v2057 = vadd.f32 %v455, %v1919
        %v2058 = vadd.f32 %v456, %v1924
        %v2059 = vadd.f32 %v457, %v1927
        %v2060 = vadd.f32 %v458, %v1932
        %v2061 = vadd.f32 %v459, %v1935
        %v2062 = vadd.f32 %v460, %v1940
        %v2063 = vadd.f32 %v461, %v1943
        %v2064 = vadd.f32 %v462, %v1948
        %v2065 = vadd.f32 %v463, %v1951
        %v2066 = vadd.f32 %v464, %v1956
        %v2067 = vadd.f32 %v465, %v1959
        %v2068 = vadd.f32 %v466, %v1964
        %v2069 = vadd.f32 %v467, %v1967
        %v2070 = vadd.f32 %v468, %v1972
        %v2071 = vadd.f32 %v469, %v1975
        %v2072 = vadd.f32 %v470, %v1980
        %v2073 = vadd.f32 %v471, %v1983
        %v2074 = vadd.f32 %v472, %v1988
        %v2075 = vadd.f32 %v473, %v1991
        %v2076 = vadd.f32 %v474, %v1996
        %v2077 = vadd.f32 %v475, %v1999
        %v2078 = vadd.f32 %v476, %v2004
        %v2079 = vadd.f32 %v477, %v2007
        %v2080 = vadd.f32 %v478, %v2012
        %v2081 = vadd.f32 %v479, %v2015
        %2082 = vst [vmem:[#allocation2] sm:$0xff] %v2018
        %2083 = vst [vmem:[#allocation2 + $0x8] sm:$0xff] %v2019
        %2084 = vst [vmem:[#allocation2 + $0x10] sm:$0xff] %v2020
        %2085 = vst [vmem:[#allocation2 + $0x18] sm:$0xff] %v2021
        %2086 = vst [vmem:[#allocation2 + $0x20] sm:$0xff] %v2022
        %2087 = vst [vmem:[#allocation2 + $0x28] sm:$0xff] %v2023
        %2088 = vst [vmem:[#allocation2 + $0x30] sm:$0xff] %v2024
        %2089 = vst [vmem:[#allocation2 + $0x38] sm:$0xff] %v2025
        %2090 = vst [vmem:[#allocation2 + $0x40] sm:$0xff] %v2026
        %2091 = vst [vmem:[#allocation2 + $0x48] sm:$0xff] %v2027
        %2092 = vst [vmem:[#allocation2 + $0x50] sm:$0xff] %v2028
        %2093 = vst [vmem:[#allocation2 + $0x58] sm:$0xff] %v2029
        %2094 = vst [vmem:[#allocation2 + $0x60] sm:$0xff] %v2030
        %2095 = vst [vmem:[#allocation2 + $0x68] sm:$0xff] %v2031
        %2096 = vst [vmem:[#allocation2 + $0x70] sm:$0xff] %v2032
        %2097 = vst [vmem:[#allocation2 + $0x78] sm:$0xff] %v2033
        %2098 = vst [vmem:[#allocation2 + $0x80] sm:$0xff] %v2034
        %2099 = vst [vmem:[#allocation2 + $0x88] sm:$0xff] %v2035
        %2100 = vst [vmem:[#allocation2 + $0x90] sm:$0xff] %v2036
        %2101 = vst [vmem:[#allocation2 + $0x98] sm:$0xff] %v2037
        %2102 = vst [vmem:[#allocation2 + $0xa0] sm:$0xff] %v2038
        %2103 = vst [vmem:[#allocation2 + $0xa8] sm:$0xff] %v2039
        %2104 = vst [vmem:[#allocation2 + $0xb0] sm:$0xff] %v2040
        %2105 = vst [vmem:[#allocation2 + $0xb8] sm:$0xff] %v2041
        %2106 = vst [vmem:[#allocation2 + $0xc0] sm:$0xff] %v2042
        %2107 = vst [vmem:[#allocation2 + $0xc8] sm:$0xff] %v2043
        %2108 = vst [vmem:[#allocation2 + $0xd0] sm:$0xff] %v2044
        %2109 = vst [vmem:[#allocation2 + $0xd8] sm:$0xff] %v2045
        %2110 = vst [vmem:[#allocation2 + $0xe0] sm:$0xff] %v2046
        %2111 = vst [vmem:[#allocation2 + $0xe8] sm:$0xff] %v2047
        %2112 = vst [vmem:[#allocation2 + $0xf0] sm:$0xff] %v2048
        %2113 = vst [vmem:[#allocation2 + $0xf8] sm:$0xff] %v2049
        %2114 = vst [vmem:[#allocation2 + $0x100] sm:$0xff] %v2050
        %2115 = vst [vmem:[#allocation2 + $0x108] sm:$0xff] %v2051
        %2116 = vst [vmem:[#allocation2 + $0x110] sm:$0xff] %v2052
        %2117 = vst [vmem:[#allocation2 + $0x118] sm:$0xff] %v2053
        %2118 = vst [vmem:[#allocation2 + $0x120] sm:$0xff] %v2054
        %2119 = vst [vmem:[#allocation2 + $0x128] sm:$0xff] %v2055
        %2120 = vst [vmem:[#allocation2 + $0x130] sm:$0xff] %v2056
        %2121 = vst [vmem:[#allocation2 + $0x138] sm:$0xff] %v2057
        %2122 = vst [vmem:[#allocation2 + $0x140] sm:$0xff] %v2058
        %2123 = vst [vmem:[#allocation2 + $0x148] sm:$0xff] %v2059
        %2124 = vst [vmem:[#allocation2 + $0x150] sm:$0xff] %v2060
        %2125 = vst [vmem:[#allocation2 + $0x158] sm:$0xff] %v2061
        %2126 = vst [vmem:[#allocation2 + $0x160] sm:$0xff] %v2062
        %2127 = vst [vmem:[#allocation2 + $0x168] sm:$0xff] %v2063
        %2128 = vst [vmem:[#allocation2 + $0x170] sm:$0xff] %v2064
        %2129 = vst [vmem:[#allocation2 + $0x178] sm:$0xff] %v2065
        %2130 = vst [vmem:[#allocation2 + $0x180] sm:$0xff] %v2066
        %2131 = vst [vmem:[#allocation2 + $0x188] sm:$0xff] %v2067
        %2132 = vst [vmem:[#allocation2 + $0x190] sm:$0xff] %v2068
        %2133 = vst [vmem:[#allocation2 + $0x198] sm:$0xff] %v2069
        %2134 = vst [vmem:[#allocation2 + $0x1a0] sm:$0xff] %v2070
        %2135 = vst [vmem:[#allocation2 + $0x1a8] sm:$0xff] %v2071
        %2136 = vst [vmem:[#allocation2 + $0x1b0] sm:$0xff] %v2072
        %2137 = vst [vmem:[#allocation2 + $0x1b8] sm:$0xff] %v2073
        %2138 = vst [vmem:[#allocation2 + $0x1c0] sm:$0xff] %v2074
        %2139 = vst [vmem:[#allocation2 + $0x1c8] sm:$0xff] %v2075
        %2140 = vst [vmem:[#allocation2 + $0x1d0] sm:$0xff] %v2076
        %2141 = vst [vmem:[#allocation2 + $0x1d8] sm:$0xff] %v2077
        %2142 = vst [vmem:[#allocation2 + $0x1e0] sm:$0xff] %v2078
        %2143 = vst [vmem:[#allocation2 + $0x1e8] sm:$0xff] %v2079
        %2144 = vst [vmem:[#allocation2 + $0x1f0] sm:$0xff] %v2080
        %2145 = vst [vmem:[#allocation2 + $0x1f8] sm:$0xff] %v2081
        %p2146 = scmp.eq.s32.totalorder %s28, 1
        // Predicated region
        $region57: #{tpu_custom_call.1} parent=35 // pred_check
          %p2147 = pneg %p2146
        $region58: #{tpu_custom_call.1} parent=35 // pred_check_branch
          %2149 = sbr.rel (%p2147) target = $region60
        $region59: #{tpu_custom_call.1} parent=35 // pred_region
          %v2150 = vld [vmem:[#allocation2] sm:$0xff]
          %v2151 = vld [vmem:[#allocation2 + $0x8] sm:$0xff]
          %v2152 = vld [vmem:[#allocation2 + $0x10] sm:$0xff]
          %v2153 = vld [vmem:[#allocation2 + $0x18] sm:$0xff]
          %v2154 = vld [vmem:[#allocation2 + $0x20] sm:$0xff]
          %v2155 = vld [vmem:[#allocation2 + $0x28] sm:$0xff]
          %v2156 = vld [vmem:[#allocation2 + $0x30] sm:$0xff]
          %v2157 = vld [vmem:[#allocation2 + $0x38] sm:$0xff]
          %v2158 = vld [vmem:[#allocation2 + $0x40] sm:$0xff]
          %v2159 = vld [vmem:[#allocation2 + $0x48] sm:$0xff]
          %v2160 = vld [vmem:[#allocation2 + $0x50] sm:$0xff]
          %v2161 = vld [vmem:[#allocation2 + $0x58] sm:$0xff]
          %v2162 = vld [vmem:[#allocation2 + $0x60] sm:$0xff]
          %v2163 = vld [vmem:[#allocation2 + $0x68] sm:$0xff]
          %v2164 = vld [vmem:[#allocation2 + $0x70] sm:$0xff]
          %v2165 = vld [vmem:[#allocation2 + $0x78] sm:$0xff]
          %v2166 = vld [vmem:[#allocation2 + $0x80] sm:$0xff]
          %v2167 = vld [vmem:[#allocation2 + $0x88] sm:$0xff]
          %v2168 = vld [vmem:[#allocation2 + $0x90] sm:$0xff]
          %v2169 = vld [vmem:[#allocation2 + $0x98] sm:$0xff]
          %v2170 = vld [vmem:[#allocation2 + $0xa0] sm:$0xff]
          %v2171 = vld [vmem:[#allocation2 + $0xa8] sm:$0xff]
          %v2172 = vld [vmem:[#allocation2 + $0xb0] sm:$0xff]
          %v2173 = vld [vmem:[#allocation2 + $0xb8] sm:$0xff]
          %v2174 = vld [vmem:[#allocation2 + $0xc0] sm:$0xff]
          %v2175 = vld [vmem:[#allocation2 + $0xc8] sm:$0xff]
          %v2176 = vld [vmem:[#allocation2 + $0xd0] sm:$0xff]
          %v2177 = vld [vmem:[#allocation2 + $0xd8] sm:$0xff]
          %v2178 = vld [vmem:[#allocation2 + $0xe0] sm:$0xff]
          %v2179 = vld [vmem:[#allocation2 + $0xe8] sm:$0xff]
          %v2180 = vld [vmem:[#allocation2 + $0xf0] sm:$0xff]
          %v2181 = vld [vmem:[#allocation2 + $0xf8] sm:$0xff]
          %v2182 = vld [vmem:[#allocation2 + $0x100] sm:$0xff]
          %v2183 = vld [vmem:[#allocation2 + $0x108] sm:$0xff]
          %v2184 = vld [vmem:[#allocation2 + $0x110] sm:$0xff]
          %v2185 = vld [vmem:[#allocation2 + $0x118] sm:$0xff]
          %v2186 = vld [vmem:[#allocation2 + $0x120] sm:$0xff]
          %v2187 = vld [vmem:[#allocation2 + $0x128] sm:$0xff]
          %v2188 = vld [vmem:[#allocation2 + $0x130] sm:$0xff]
          %v2189 = vld [vmem:[#allocation2 + $0x138] sm:$0xff]
          %v2190 = vld [vmem:[#allocation2 + $0x140] sm:$0xff]
          %v2191 = vld [vmem:[#allocation2 + $0x148] sm:$0xff]
          %v2192 = vld [vmem:[#allocation2 + $0x150] sm:$0xff]
          %v2193 = vld [vmem:[#allocation2 + $0x158] sm:$0xff]
          %v2194 = vld [vmem:[#allocation2 + $0x160] sm:$0xff]
          %v2195 = vld [vmem:[#allocation2 + $0x168] sm:$0xff]
          %v2196 = vld [vmem:[#allocation2 + $0x170] sm:$0xff]
          %v2197 = vld [vmem:[#allocation2 + $0x178] sm:$0xff]
          %v2198 = vld [vmem:[#allocation2 + $0x180] sm:$0xff]
          %v2199 = vld [vmem:[#allocation2 + $0x188] sm:$0xff]
          %v2200 = vld [vmem:[#allocation2 + $0x190] sm:$0xff]
          %v2201 = vld [vmem:[#allocation2 + $0x198] sm:$0xff]
          %v2202 = vld [vmem:[#allocation2 + $0x1a0] sm:$0xff]
          %v2203 = vld [vmem:[#allocation2 + $0x1a8] sm:$0xff]
          %v2204 = vld [vmem:[#allocation2 + $0x1b0] sm:$0xff]
          %v2205 = vld [vmem:[#allocation2 + $0x1b8] sm:$0xff]
          %v2206 = vld [vmem:[#allocation2 + $0x1c0] sm:$0xff]
          %v2207 = vld [vmem:[#allocation2 + $0x1c8] sm:$0xff]
          %v2208 = vld [vmem:[#allocation2 + $0x1d0] sm:$0xff]
          %v2209 = vld [vmem:[#allocation2 + $0x1d8] sm:$0xff]
          %v2210 = vld [vmem:[#allocation2 + $0x1e0] sm:$0xff]
          %v2211 = vld [vmem:[#allocation2 + $0x1e8] sm:$0xff]
          %v2212 = vld [vmem:[#allocation2 + $0x1f0] sm:$0xff]
          %v2213 = vld [vmem:[#allocation2 + $0x1f8] sm:$0xff]
          %v2214 = vld [vmem:[#allocation8] sm:$0x1]
          %v2216 = vlaneseq
          %v2217 = vshrl.u32 %v2216, 7
          %v2218 = vsub.s32 0, %v2217
          %v2219 = vrot.slane %v2214, %v2218
          %v2221 = vadd.f32 %v2150, %v2219
          %v2222 = vadd.f32 %v2151, %v2219
          %v2223 = vadd.f32 %v2152, %v2219
          %v2224 = vadd.f32 %v2153, %v2219
          %v2225 = vadd.f32 %v2154, %v2219
          %v2226 = vadd.f32 %v2155, %v2219
          %v2227 = vadd.f32 %v2156, %v2219
          %v2228 = vadd.f32 %v2157, %v2219
          %v2229 = vadd.f32 %v2158, %v2219
          %v2230 = vadd.f32 %v2159, %v2219
          %v2231 = vadd.f32 %v2160, %v2219
          %v2232 = vadd.f32 %v2161, %v2219
          %v2233 = vadd.f32 %v2162, %v2219
          %v2234 = vadd.f32 %v2163, %v2219
          %v2235 = vadd.f32 %v2164, %v2219
          %v2236 = vadd.f32 %v2165, %v2219
          %v2237 = vadd.f32 %v2166, %v2219
          %v2238 = vadd.f32 %v2167, %v2219
          %v2239 = vadd.f32 %v2168, %v2219
          %v2240 = vadd.f32 %v2169, %v2219
          %v2241 = vadd.f32 %v2170, %v2219
          %v2242 = vadd.f32 %v2171, %v2219
          %v2243 = vadd.f32 %v2172, %v2219
          %v2244 = vadd.f32 %v2173, %v2219
          %v2245 = vadd.f32 %v2174, %v2219
          %v2246 = vadd.f32 %v2175, %v2219
          %v2247 = vadd.f32 %v2176, %v2219
          %v2248 = vadd.f32 %v2177, %v2219
          %v2249 = vadd.f32 %v2178, %v2219
          %v2250 = vadd.f32 %v2179, %v2219
          %v2251 = vadd.f32 %v2180, %v2219
          %v2252 = vadd.f32 %v2181, %v2219
          %v2253 = vadd.f32 %v2182, %v2219
          %v2254 = vadd.f32 %v2183, %v2219
          %v2255 = vadd.f32 %v2184, %v2219
          %v2256 = vadd.f32 %v2185, %v2219
          %v2257 = vadd.f32 %v2186, %v2219
          %v2258 = vadd.f32 %v2187, %v2219
          %v2259 = vadd.f32 %v2188, %v2219
          %v2260 = vadd.f32 %v2189, %v2219
          %v2261 = vadd.f32 %v2190, %v2219
          %v2262 = vadd.f32 %v2191, %v2219
          %v2263 = vadd.f32 %v2192, %v2219
          %v2264 = vadd.f32 %v2193, %v2219
          %v2265 = vadd.f32 %v2194, %v2219
          %v2266 = vadd.f32 %v2195, %v2219
          %v2267 = vadd.f32 %v2196, %v2219
          %v2268 = vadd.f32 %v2197, %v2219
          %v2269 = vadd.f32 %v2198, %v2219
          %v2270 = vadd.f32 %v2199, %v2219
          %v2271 = vadd.f32 %v2200, %v2219
          %v2272 = vadd.f32 %v2201, %v2219
          %v2273 = vadd.f32 %v2202, %v2219
          %v2274 = vadd.f32 %v2203, %v2219
          %v2275 = vadd.f32 %v2204, %v2219
          %v2276 = vadd.f32 %v2205, %v2219
          %v2277 = vadd.f32 %v2206, %v2219
          %v2278 = vadd.f32 %v2207, %v2219
          %v2279 = vadd.f32 %v2208, %v2219
          %v2280 = vadd.f32 %v2209, %v2219
          %v2281 = vadd.f32 %v2210, %v2219
          %v2282 = vadd.f32 %v2211, %v2219
          %v2283 = vadd.f32 %v2212, %v2219
          %v2284 = vadd.f32 %v2213, %v2219
          %v2285 = vmax.f32 %v2221, 0.0
          %v2286 = vmax.f32 %v2222, 0.0
          %v2287 = vmax.f32 %v2223, 0.0
          %v2288 = vmax.f32 %v2224, 0.0
          %v2289 = vmax.f32 %v2225, 0.0
          %v2290 = vmax.f32 %v2226, 0.0
          %v2291 = vmax.f32 %v2227, 0.0
          %v2292 = vmax.f32 %v2228, 0.0
          %v2293 = vmax.f32 %v2229, 0.0
          %v2294 = vmax.f32 %v2230, 0.0
          %v2295 = vmax.f32 %v2231, 0.0
          %v2296 = vmax.f32 %v2232, 0.0
          %v2297 = vmax.f32 %v2233, 0.0
          %v2298 = vmax.f32 %v2234, 0.0
          %v2299 = vmax.f32 %v2235, 0.0
          %v2300 = vmax.f32 %v2236, 0.0
          %v2301 = vmax.f32 %v2237, 0.0
          %v2302 = vmax.f32 %v2238, 0.0
          %v2303 = vmax.f32 %v2239, 0.0
          %v2304 = vmax.f32 %v2240, 0.0
          %v2305 = vmax.f32 %v2241, 0.0
          %v2306 = vmax.f32 %v2242, 0.0
          %v2307 = vmax.f32 %v2243, 0.0
          %v2308 = vmax.f32 %v2244, 0.0
          %v2309 = vmax.f32 %v2245, 0.0
          %v2310 = vmax.f32 %v2246, 0.0
          %v2311 = vmax.f32 %v2247, 0.0
          %v2312 = vmax.f32 %v2248, 0.0
          %v2313 = vmax.f32 %v2249, 0.0
          %v2314 = vmax.f32 %v2250, 0.0
          %v2315 = vmax.f32 %v2251, 0.0
          %v2316 = vmax.f32 %v2252, 0.0
          %v2317 = vmax.f32 %v2253, 0.0
          %v2318 = vmax.f32 %v2254, 0.0
          %v2319 = vmax.f32 %v2255, 0.0
          %v2320 = vmax.f32 %v2256, 0.0
          %v2321 = vmax.f32 %v2257, 0.0
          %v2322 = vmax.f32 %v2258, 0.0
          %v2323 = vmax.f32 %v2259, 0.0
          %v2324 = vmax.f32 %v2260, 0.0
          %v2325 = vmax.f32 %v2261, 0.0
          %v2326 = vmax.f32 %v2262, 0.0
          %v2327 = vmax.f32 %v2263, 0.0
          %v2328 = vmax.f32 %v2264, 0.0
          %v2329 = vmax.f32 %v2265, 0.0
          %v2330 = vmax.f32 %v2266, 0.0
          %v2331 = vmax.f32 %v2267, 0.0
          %v2332 = vmax.f32 %v2268, 0.0
          %v2333 = vmax.f32 %v2269, 0.0
          %v2334 = vmax.f32 %v2270, 0.0
          %v2335 = vmax.f32 %v2271, 0.0
          %v2336 = vmax.f32 %v2272, 0.0
          %v2337 = vmax.f32 %v2273, 0.0
          %v2338 = vmax.f32 %v2274, 0.0
          %v2339 = vmax.f32 %v2275, 0.0
          %v2340 = vmax.f32 %v2276, 0.0
          %v2341 = vmax.f32 %v2277, 0.0
          %v2342 = vmax.f32 %v2278, 0.0
          %v2343 = vmax.f32 %v2279, 0.0
          %v2344 = vmax.f32 %v2280, 0.0
          %v2345 = vmax.f32 %v2281, 0.0
          %v2346 = vmax.f32 %v2282, 0.0
          %v2347 = vmax.f32 %v2283, 0.0
          %v2348 = vmax.f32 %v2284, 0.0
          %v2349 = vpack.c.bf16 %v2286, %v2285
          %v2350 = vpack.c.bf16 %v2288, %v2287
          %v2351 = vpack.c.bf16 %v2290, %v2289
          %v2352 = vpack.c.bf16 %v2292, %v2291
          %v2353 = vpack.c.bf16 %v2294, %v2293
          %v2354 = vpack.c.bf16 %v2296, %v2295
          %v2355 = vpack.c.bf16 %v2298, %v2297
          %v2356 = vpack.c.bf16 %v2300, %v2299
          %v2357 = vpack.c.bf16 %v2302, %v2301
          %v2358 = vpack.c.bf16 %v2304, %v2303
          %v2359 = vpack.c.bf16 %v2306, %v2305
          %v2360 = vpack.c.bf16 %v2308, %v2307
          %v2361 = vpack.c.bf16 %v2310, %v2309
          %v2362 = vpack.c.bf16 %v2312, %v2311
          %v2363 = vpack.c.bf16 %v2314, %v2313
          %v2364 = vpack.c.bf16 %v2316, %v2315
          %v2365 = vpack.c.bf16 %v2318, %v2317
          %v2366 = vpack.c.bf16 %v2320, %v2319
          %v2367 = vpack.c.bf16 %v2322, %v2321
          %v2368 = vpack.c.bf16 %v2324, %v2323
          %v2369 = vpack.c.bf16 %v2326, %v2325
          %v2370 = vpack.c.bf16 %v2328, %v2327
          %v2371 = vpack.c.bf16 %v2330, %v2329
          %v2372 = vpack.c.bf16 %v2332, %v2331
          %v2373 = vpack.c.bf16 %v2334, %v2333
          %v2374 = vpack.c.bf16 %v2336, %v2335
          %v2375 = vpack.c.bf16 %v2338, %v2337
          %v2376 = vpack.c.bf16 %v2340, %v2339
          %v2377 = vpack.c.bf16 %v2342, %v2341
          %v2378 = vpack.c.bf16 %v2344, %v2343
          %v2379 = vpack.c.bf16 %v2346, %v2345
          %v2380 = vpack.c.bf16 %v2348, %v2347
          %v2381 = vld [vmem:[#allocation9] sm:$0xf]
          %v2382 = vld [vmem:[#allocation9 + $0x4] sm:$0xf]
          %v2383 = vld [vmem:[#allocation9 + $0x8] sm:$0xf]
          %v2384 = vld [vmem:[#allocation9 + $0xc] sm:$0xf]
          %v2385 = vld [vmem:[#allocation9 + $0x10] sm:$0xf]
          %v2386 = vld [vmem:[#allocation9 + $0x14] sm:$0xf]
          %v2387 = vld [vmem:[#allocation9 + $0x18] sm:$0xf]
          %v2388 = vld [vmem:[#allocation9 + $0x1c] sm:$0xf]
          %v2389 = vld [vmem:[#allocation9 + $0x20] sm:$0xf]
          %v2390 = vld [vmem:[#allocation9 + $0x24] sm:$0xf]
          %v2391 = vld [vmem:[#allocation9 + $0x28] sm:$0xf]
          %v2392 = vld [vmem:[#allocation9 + $0x2c] sm:$0xf]
          %v2393 = vld [vmem:[#allocation9 + $0x30] sm:$0xf]
          %v2394 = vld [vmem:[#allocation9 + $0x34] sm:$0xf]
          %v2395 = vld [vmem:[#allocation9 + $0x38] sm:$0xf]
          %v2396 = vld [vmem:[#allocation9 + $0x3c] sm:$0xf]
          %v2413 = vunpack.c.l.b16 %v2381
          %v2414 = vunpack.c.l.b16 %v2382
          %v2415 = vunpack.c.l.b16 %v2383
          %v2416 = vunpack.c.l.b16 %v2384
          %v2417 = vunpack.c.l.b16 %v2385
          %v2418 = vunpack.c.l.b16 %v2386
          %v2419 = vunpack.c.l.b16 %v2387
          %v2420 = vunpack.c.l.b16 %v2388
          %v2421 = vunpack.c.l.b16 %v2389
          %v2422 = vunpack.c.l.b16 %v2390
          %v2423 = vunpack.c.l.b16 %v2391
          %v2424 = vunpack.c.l.b16 %v2392
          %v2425 = vunpack.c.l.b16 %v2393
          %v2426 = vunpack.c.l.b16 %v2394
          %v2427 = vunpack.c.l.b16 %v2395
          %v2428 = vunpack.c.l.b16 %v2396
          %v2429 = vpack.c.b16 %v2414, %v2413
          %v2430 = vpack.c.b16 %v2416, %v2415
          %v2431 = vpack.c.b16 %v2418, %v2417
          %v2432 = vpack.c.b16 %v2420, %v2419
          %v2433 = vpack.c.b16 %v2422, %v2421
          %v2434 = vpack.c.b16 %v2424, %v2423
          %v2435 = vpack.c.b16 %v2426, %v2425
          %v2436 = vpack.c.b16 %v2428, %v2427
          %2445 = vmatprep.subr.bf16.mxu0 0
          %2446 = vmatpush1.bf16.msra.mxu0 %v2429
          %2447 = vmatprep.subr.bf16.mxu0 0
          %2448 = vmatpush1.bf16.msra.mxu0 %v2430
          %2449 = vmatprep.subr.bf16.mxu0 0
          %2450 = vmatpush1.bf16.msra.mxu0 %v2431
          %2451 = vmatprep.subr.bf16.mxu0 0
          %2452 = vmatpush1.bf16.msra.mxu0 %v2432
          %2453 = vmatprep.subr.bf16.mxu0 0
          %2454 = vmatpush1.bf16.msra.mxu0 %v2433
          %2455 = vmatprep.subr.bf16.mxu0 0
          %2456 = vmatpush1.bf16.msra.mxu0 %v2434
          %2457 = vmatprep.subr.bf16.mxu0 0
          %2458 = vmatpush1.bf16.msra.mxu0 %v2435
          %2459 = vmatprep.subr.bf16.mxu0 0
          %2460 = vmatpush1.bf16.msra.mxu0 %v2436
          %2461 = vmatprep.subr.bf16.mxu0 0
          %2462 = vmatpush1.bf16.msra.mxu0 0
          %2463 = vmatprep.subr.bf16.mxu0 0
          %2464 = vmatpush1.bf16.msra.mxu0 0
          %2465 = vmatprep.subr.bf16.mxu0 0
          %2466 = vmatpush1.bf16.msra.mxu0 0
          %2467 = vmatprep.subr.bf16.mxu0 0
          %2468 = vmatpush1.bf16.msra.mxu0 0
          %2469 = vmatprep.subr.bf16.mxu0 0
          %2470 = vmatpush1.bf16.msra.mxu0 0
          %2471 = vmatprep.subr.bf16.mxu0 0
          %2472 = vmatpush1.bf16.msra.mxu0 0
          %2473 = vmatprep.subr.bf16.mxu0 0
          %2474 = vmatpush1.bf16.msra.mxu0 0
          %2475 = vmatprep.subr.bf16.mxu0 0
          %2476 = vmatpush1.bf16.msra.mxu0 0
          %2477 = vmatprep.mubr.bf16.mxu0 0
          %2478 = vmatmul.mubr.bf16.gmra.mrb[0].mxu0 %v2349
          %v2479 = vpop.f32.mrb[0].mxu0
          %v2480 = vadd.f32 0.0, %v2479
          %v2481 = vpop.f32.mrb[0].mxu0
          %v2482 = vpop.f32.mrb[0].mxu0
          %v2483 = vadd.f32 0.0, %v2482
          %v2484 = vpop.f32.mrb[0].mxu0
          %2485 = vmatprep.mubr.bf16.mxu0 0
          %2486 = vmatmul.mubr.bf16.gmra.mrb[0].mxu0 %v2350
          %v2487 = vpop.f32.mrb[0].mxu0
          %v2488 = vadd.f32 0.0, %v2487
          %v2489 = vpop.f32.mrb[0].mxu0
          %v2490 = vpop.f32.mrb[0].mxu0
          %v2491 = vadd.f32 0.0, %v2490
          %v2492 = vpop.f32.mrb[0].mxu0
          %2493 = vmatprep.mubr.bf16.mxu0 0
          %2494 = vmatmul.mubr.bf16.gmra.mrb[0].mxu0 %v2351
          %v2495 = vpop.f32.mrb[0].mxu0
          %v2496 = vadd.f32 0.0, %v2495
          %v2497 = vpop.f32.mrb[0].mxu0
          %v2498 = vpop.f32.mrb[0].mxu0
          %v2499 = vadd.f32 0.0, %v2498
          %v2500 = vpop.f32.mrb[0].mxu0
          %2501 = vmatprep.mubr.bf16.mxu0 0
          %2502 = vmatmul.mubr.bf16.gmra.mrb[0].mxu0 %v2352
          %v2503 = vpop.f32.mrb[0].mxu0
          %v2504 = vadd.f32 0.0, %v2503
          %v2505 = vpop.f32.mrb[0].mxu0
          %v2506 = vpop.f32.mrb[0].mxu0
          %v2507 = vadd.f32 0.0, %v2506
          %v2508 = vpop.f32.mrb[0].mxu0
          %2509 = vmatprep.mubr.bf16.mxu0 0
          %2510 = vmatmul.mubr.bf16.gmra.mrb[0].mxu0 %v2353
          %v2511 = vpop.f32.mrb[0].mxu0
          %v2512 = vadd.f32 0.0, %v2511
          %v2513 = vpop.f32.mrb[0].mxu0
          %v2514 = vpop.f32.mrb[0].mxu0
          %v2515 = vadd.f32 0.0, %v2514
          %v2516 = vpop.f32.mrb[0].mxu0
          %2517 = vmatprep.mubr.bf16.mxu0 0
          %2518 = vmatmul.mubr.bf16.gmra.mrb[0].mxu0 %v2354
          %v2519 = vpop.f32.mrb[0].mxu0
          %v2520 = vadd.f32 0.0, %v2519
          %v2521 = vpop.f32.mrb[0].mxu0
          %v2522 = vpop.f32.mrb[0].mxu0
          %v2523 = vadd.f32 0.0, %v2522
          %v2524 = vpop.f32.mrb[0].mxu0
          %2525 = vmatprep.mubr.bf16.mxu0 0
          %2526 = vmatmul.mubr.bf16.gmra.mrb[0].mxu0 %v2355
          %v2527 = vpop.f32.mrb[0].mxu0
          %v2528 = vadd.f32 0.0, %v2527
          %v2529 = vpop.f32.mrb[0].mxu0
          %v2530 = vpop.f32.mrb[0].mxu0
          %v2531 = vadd.f32 0.0, %v2530
          %v2532 = vpop.f32.mrb[0].mxu0
          %2533 = vmatprep.mubr.bf16.mxu0 0
          %2534 = vmatmul.mubr.bf16.gmra.mrb[0].mxu0 %v2356
          %v2535 = vpop.f32.mrb[0].mxu0
          %v2536 = vadd.f32 0.0, %v2535
          %v2537 = vpop.f32.mrb[0].mxu0
          %v2538 = vpop.f32.mrb[0].mxu0
          %v2539 = vadd.f32 0.0, %v2538
          %v2540 = vpop.f32.mrb[0].mxu0
          %2541 = vmatprep.mubr.bf16.mxu0 0
          %2542 = vmatmul.mubr.bf16.gmra.mrb[0].mxu0 %v2357
          %v2543 = vpop.f32.mrb[0].mxu0
          %v2544 = vadd.f32 0.0, %v2543
          %v2545 = vpop.f32.mrb[0].mxu0
          %v2546 = vpop.f32.mrb[0].mxu0
          %v2547 = vadd.f32 0.0, %v2546
          %v2548 = vpop.f32.mrb[0].mxu0
          %2549 = vmatprep.mubr.bf16.mxu0 0
          %2550 = vmatmul.mubr.bf16.gmra.mrb[0].mxu0 %v2358
          %v2551 = vpop.f32.mrb[0].mxu0
          %v2552 = vadd.f32 0.0, %v2551
          %v2553 = vpop.f32.mrb[0].mxu0
          %v2554 = vpop.f32.mrb[0].mxu0
          %v2555 = vadd.f32 0.0, %v2554
          %v2556 = vpop.f32.mrb[0].mxu0
          %2557 = vmatprep.mubr.bf16.mxu0 0
          %2558 = vmatmul.mubr.bf16.gmra.mrb[0].mxu0 %v2359
          %v2559 = vpop.f32.mrb[0].mxu0
          %v2560 = vadd.f32 0.0, %v2559
          %v2561 = vpop.f32.mrb[0].mxu0
          %v2562 = vpop.f32.mrb[0].mxu0
          %v2563 = vadd.f32 0.0, %v2562
          %v2564 = vpop.f32.mrb[0].mxu0
          %2565 = vmatprep.mubr.bf16.mxu0 0
          %2566 = vmatmul.mubr.bf16.gmra.mrb[0].mxu0 %v2360
          %v2567 = vpop.f32.mrb[0].mxu0
          %v2568 = vadd.f32 0.0, %v2567
          %v2569 = vpop.f32.mrb[0].mxu0
          %v2570 = vpop.f32.mrb[0].mxu0
          %v2571 = vadd.f32 0.0, %v2570
          %v2572 = vpop.f32.mrb[0].mxu0
          %2573 = vmatprep.mubr.bf16.mxu0 0
          %2574 = vmatmul.mubr.bf16.gmra.mrb[0].mxu0 %v2361
          %v2575 = vpop.f32.mrb[0].mxu0
          %v2576 = vadd.f32 0.0, %v2575
          %v2577 = vpop.f32.mrb[0].mxu0
          %v2578 = vpop.f32.mrb[0].mxu0
          %v2579 = vadd.f32 0.0, %v2578
          %v2580 = vpop.f32.mrb[0].mxu0
          %2581 = vmatprep.mubr.bf16.mxu0 0
          %2582 = vmatmul.mubr.bf16.gmra.mrb[0].mxu0 %v2362
          %v2583 = vpop.f32.mrb[0].mxu0
          %v2584 = vadd.f32 0.0, %v2583
          %v2585 = vpop.f32.mrb[0].mxu0
          %v2586 = vpop.f32.mrb[0].mxu0
          %v2587 = vadd.f32 0.0, %v2586
          %v2588 = vpop.f32.mrb[0].mxu0
          %2589 = vmatprep.mubr.bf16.mxu0 0
          %2590 = vmatmul.mubr.bf16.gmra.mrb[0].mxu0 %v2363
          %v2591 = vpop.f32.mrb[0].mxu0
          %v2592 = vadd.f32 0.0, %v2591
          %v2593 = vpop.f32.mrb[0].mxu0
          %v2594 = vpop.f32.mrb[0].mxu0
          %v2595 = vadd.f32 0.0, %v2594
          %v2596 = vpop.f32.mrb[0].mxu0
          %2597 = vmatprep.mubr.bf16.mxu0 0
          %2598 = vmatmul.mubr.bf16.gmra.mrb[0].mxu0 %v2364
          %v2599 = vpop.f32.mrb[0].mxu0
          %v2600 = vadd.f32 0.0, %v2599
          %v2601 = vpop.f32.mrb[0].mxu0
          %v2602 = vpop.f32.mrb[0].mxu0
          %v2603 = vadd.f32 0.0, %v2602
          %v2604 = vpop.f32.mrb[0].mxu0
          %2605 = vmatprep.mubr.bf16.mxu0 0
          %2606 = vmatmul.mubr.bf16.gmra.mrb[0].mxu0 %v2365
          %v2607 = vpop.f32.mrb[0].mxu0
          %v2608 = vadd.f32 0.0, %v2607
          %v2609 = vpop.f32.mrb[0].mxu0
          %v2610 = vpop.f32.mrb[0].mxu0
          %v2611 = vadd.f32 0.0, %v2610
          %v2612 = vpop.f32.mrb[0].mxu0
          %2613 = vmatprep.mubr.bf16.mxu0 0
          %2614 = vmatmul.mubr.bf16.gmra.mrb[0].mxu0 %v2366
          %v2615 = vpop.f32.mrb[0].mxu0
          %v2616 = vadd.f32 0.0, %v2615
          %v2617 = vpop.f32.mrb[0].mxu0
          %v2618 = vpop.f32.mrb[0].mxu0
          %v2619 = vadd.f32 0.0, %v2618
          %v2620 = vpop.f32.mrb[0].mxu0
          %2621 = vmatprep.mubr.bf16.mxu0 0
          %2622 = vmatmul.mubr.bf16.gmra.mrb[0].mxu0 %v2367
          %v2623 = vpop.f32.mrb[0].mxu0
          %v2624 = vadd.f32 0.0, %v2623
          %v2625 = vpop.f32.mrb[0].mxu0
          %v2626 = vpop.f32.mrb[0].mxu0
          %v2627 = vadd.f32 0.0, %v2626
          %v2628 = vpop.f32.mrb[0].mxu0
          %2629 = vmatprep.mubr.bf16.mxu0 0
          %2630 = vmatmul.mubr.bf16.gmra.mrb[0].mxu0 %v2368
          %v2631 = vpop.f32.mrb[0].mxu0
          %v2632 = vadd.f32 0.0, %v2631
          %v2633 = vpop.f32.mrb[0].mxu0
          %v2634 = vpop.f32.mrb[0].mxu0
          %v2635 = vadd.f32 0.0, %v2634
          %v2636 = vpop.f32.mrb[0].mxu0
          %2637 = vmatprep.mubr.bf16.mxu0 0
          %2638 = vmatmul.mubr.bf16.gmra.mrb[0].mxu0 %v2369
          %v2639 = vpop.f32.mrb[0].mxu0
          %v2640 = vadd.f32 0.0, %v2639
          %v2641 = vpop.f32.mrb[0].mxu0
          %v2642 = vpop.f32.mrb[0].mxu0
          %v2643 = vadd.f32 0.0, %v2642
          %v2644 = vpop.f32.mrb[0].mxu0
          %2645 = vmatprep.mubr.bf16.mxu0 0
          %2646 = vmatmul.mubr.bf16.gmra.mrb[0].mxu0 %v2370
          %v2647 = vpop.f32.mrb[0].mxu0
          %v2648 = vadd.f32 0.0, %v2647
          %v2649 = vpop.f32.mrb[0].mxu0
          %v2650 = vpop.f32.mrb[0].mxu0
          %v2651 = vadd.f32 0.0, %v2650
          %v2652 = vpop.f32.mrb[0].mxu0
          %2653 = vmatprep.mubr.bf16.mxu0 0
          %2654 = vmatmul.mubr.bf16.gmra.mrb[0].mxu0 %v2371
          %v2655 = vpop.f32.mrb[0].mxu0
          %v2656 = vadd.f32 0.0, %v2655
          %v2657 = vpop.f32.mrb[0].mxu0
          %v2658 = vpop.f32.mrb[0].mxu0
          %v2659 = vadd.f32 0.0, %v2658
          %v2660 = vpop.f32.mrb[0].mxu0
          %2661 = vmatprep.mubr.bf16.mxu0 0
          %2662 = vmatmul.mubr.bf16.gmra.mrb[0].mxu0 %v2372
          %v2663 = vpop.f32.mrb[0].mxu0
          %v2664 = vadd.f32 0.0, %v2663
          %v2665 = vpop.f32.mrb[0].mxu0
          %v2666 = vpop.f32.mrb[0].mxu0
          %v2667 = vadd.f32 0.0, %v2666
          %v2668 = vpop.f32.mrb[0].mxu0
          %2669 = vmatprep.mubr.bf16.mxu0 0
          %2670 = vmatmul.mubr.bf16.gmra.mrb[0].mxu0 %v2373
          %v2671 = vpop.f32.mrb[0].mxu0
          %v2672 = vadd.f32 0.0, %v2671
          %v2673 = vpop.f32.mrb[0].mxu0
          %v2674 = vpop.f32.mrb[0].mxu0
          %v2675 = vadd.f32 0.0, %v2674
          %v2676 = vpop.f32.mrb[0].mxu0
          %2677 = vmatprep.mubr.bf16.mxu0 0
          %2678 = vmatmul.mubr.bf16.gmra.mrb[0].mxu0 %v2374
          %v2679 = vpop.f32.mrb[0].mxu0
          %v2680 = vadd.f32 0.0, %v2679
          %v2681 = vpop.f32.mrb[0].mxu0
          %v2682 = vpop.f32.mrb[0].mxu0
          %v2683 = vadd.f32 0.0, %v2682
          %v2684 = vpop.f32.mrb[0].mxu0
          %2685 = vmatprep.mubr.bf16.mxu0 0
          %2686 = vmatmul.mubr.bf16.gmra.mrb[0].mxu0 %v2375
          %v2687 = vpop.f32.mrb[0].mxu0
          %v2688 = vadd.f32 0.0, %v2687
          %v2689 = vpop.f32.mrb[0].mxu0
          %v2690 = vpop.f32.mrb[0].mxu0
          %v2691 = vadd.f32 0.0, %v2690
          %v2692 = vpop.f32.mrb[0].mxu0
          %2693 = vmatprep.mubr.bf16.mxu0 0
          %2694 = vmatmul.mubr.bf16.gmra.mrb[0].mxu0 %v2376
          %v2695 = vpop.f32.mrb[0].mxu0
          %v2696 = vadd.f32 0.0, %v2695
          %v2697 = vpop.f32.mrb[0].mxu0
          %v2698 = vpop.f32.mrb[0].mxu0
          %v2699 = vadd.f32 0.0, %v2698
          %v2700 = vpop.f32.mrb[0].mxu0
          %2701 = vmatprep.mubr.bf16.mxu0 0
          %2702 = vmatmul.mubr.bf16.gmra.mrb[0].mxu0 %v2377
          %v2703 = vpop.f32.mrb[0].mxu0
          %v2704 = vadd.f32 0.0, %v2703
          %v2705 = vpop.f32.mrb[0].mxu0
          %v2706 = vpop.f32.mrb[0].mxu0
          %v2707 = vadd.f32 0.0, %v2706
          %v2708 = vpop.f32.mrb[0].mxu0
          %2709 = vmatprep.mubr.bf16.mxu0 0
          %2710 = vmatmul.mubr.bf16.gmra.mrb[0].mxu0 %v2378
          %v2711 = vpop.f32.mrb[0].mxu0
          %v2712 = vadd.f32 0.0, %v2711
          %v2713 = vpop.f32.mrb[0].mxu0
          %v2714 = vpop.f32.mrb[0].mxu0
          %v2715 = vadd.f32 0.0, %v2714
          %v2716 = vpop.f32.mrb[0].mxu0
          %2717 = vmatprep.mubr.bf16.mxu0 0
          %2718 = vmatmul.mubr.bf16.gmra.mrb[0].mxu0 %v2379
          %v2719 = vpop.f32.mrb[0].mxu0
          %v2720 = vadd.f32 0.0, %v2719
          %v2721 = vpop.f32.mrb[0].mxu0
          %v2722 = vpop.f32.mrb[0].mxu0
          %v2723 = vadd.f32 0.0, %v2722
          %v2724 = vpop.f32.mrb[0].mxu0
          %2725 = vmatprep.mubr.bf16.mxu0 0
          %2726 = vmatmul.mubr.bf16.gmra.mrb[0].mxu0 %v2380
          %v2727 = vpop.f32.mrb[0].mxu0
          %v2728 = vadd.f32 0.0, %v2727
          %v2729 = vpop.f32.mrb[0].mxu0
          %v2730 = vpop.f32.mrb[0].mxu0
          %v2731 = vadd.f32 0.0, %v2730
          %v2732 = vpop.f32.mrb[0].mxu0
          %2733 = vdwg.mxu0
          %v2734 = vpack.c.bf16 %v2483, %v2480
          %v2735 = vpack.c.bf16 %v2491, %v2488
          %v2736 = vpack.c.bf16 %v2499, %v2496
          %v2737 = vpack.c.bf16 %v2507, %v2504
          %v2738 = vpack.c.bf16 %v2515, %v2512
          %v2739 = vpack.c.bf16 %v2523, %v2520
          %v2740 = vpack.c.bf16 %v2531, %v2528
          %v2741 = vpack.c.bf16 %v2539, %v2536
          %v2742 = vpack.c.bf16 %v2547, %v2544
          %v2743 = vpack.c.bf16 %v2555, %v2552
          %v2744 = vpack.c.bf16 %v2563, %v2560
          %v2745 = vpack.c.bf16 %v2571, %v2568
          %v2746 = vpack.c.bf16 %v2579, %v2576
          %v2747 = vpack.c.bf16 %v2587, %v2584
          %v2748 = vpack.c.bf16 %v2595, %v2592
          %v2749 = vpack.c.bf16 %v2603, %v2600
          %v2750 = vpack.c.bf16 %v2611, %v2608
          %v2751 = vpack.c.bf16 %v2619, %v2616
          %v2752 = vpack.c.bf16 %v2627, %v2624
          %v2753 = vpack.c.bf16 %v2635, %v2632
          %v2754 = vpack.c.bf16 %v2643, %v2640
          %v2755 = vpack.c.bf16 %v2651, %v2648
          %v2756 = vpack.c.bf16 %v2659, %v2656
          %v2757 = vpack.c.bf16 %v2667, %v2664
          %v2758 = vpack.c.bf16 %v2675, %v2672
          %v2759 = vpack.c.bf16 %v2683, %v2680
          %v2760 = vpack.c.bf16 %v2691, %v2688
          %v2761 = vpack.c.bf16 %v2699, %v2696
          %v2762 = vpack.c.bf16 %v2707, %v2704
          %v2763 = vpack.c.bf16 %v2715, %v2712
          %v2764 = vpack.c.bf16 %v2723, %v2720
          %v2765 = vpack.c.bf16 %v2731, %v2728
          %v2798 = vunpack.c.l.b16 %v2734
          %v2799 = vunpack.c.h.b16 %v2734
          %v2800 = vunpack.c.l.b16 %v2735
          %v2801 = vunpack.c.h.b16 %v2735
          %v2802 = vunpack.c.l.b16 %v2736
          %v2803 = vunpack.c.h.b16 %v2736
          %v2804 = vunpack.c.l.b16 %v2737
          %v2805 = vunpack.c.h.b16 %v2737
          %v2806 = vunpack.c.l.b16 %v2738
          %v2807 = vunpack.c.h.b16 %v2738
          %v2808 = vunpack.c.l.b16 %v2739
          %v2809 = vunpack.c.h.b16 %v2739
          %v2810 = vunpack.c.l.b16 %v2740
          %v2811 = vunpack.c.h.b16 %v2740
          %v2812 = vunpack.c.l.b16 %v2741
          %v2813 = vunpack.c.h.b16 %v2741
          %v2814 = vunpack.c.l.b16 %v2742
          %v2815 = vunpack.c.h.b16 %v2742
          %v2816 = vunpack.c.l.b16 %v2743
          %v2817 = vunpack.c.h.b16 %v2743
          %v2818 = vunpack.c.l.b16 %v2744
          %v2819 = vunpack.c.h.b16 %v2744
          %v2820 = vunpack.c.l.b16 %v2745
          %v2821 = vunpack.c.h.b16 %v2745
          %v2822 = vunpack.c.l.b16 %v2746
          %v2823 = vunpack.c.h.b16 %v2746
          %v2824 = vunpack.c.l.b16 %v2747
          %v2825 = vunpack.c.h.b16 %v2747
          %v2826 = vunpack.c.l.b16 %v2748
          %v2827 = vunpack.c.h.b16 %v2748
          %v2828 = vunpack.c.l.b16 %v2749
          %v2829 = vunpack.c.h.b16 %v2749
          %v2830 = vunpack.c.l.b16 %v2750
          %v2831 = vunpack.c.h.b16 %v2750
          %v2832 = vunpack.c.l.b16 %v2751
          %v2833 = vunpack.c.h.b16 %v2751
          %v2834 = vunpack.c.l.b16 %v2752
          %v2835 = vunpack.c.h.b16 %v2752
          %v2836 = vunpack.c.l.b16 %v2753
          %v2837 = vunpack.c.h.b16 %v2753
          %v2838 = vunpack.c.l.b16 %v2754
          %v2839 = vunpack.c.h.b16 %v2754
          %v2840 = vunpack.c.l.b16 %v2755
          %v2841 = vunpack.c.h.b16 %v2755
          %v2842 = vunpack.c.l.b16 %v2756
          %v2843 = vunpack.c.h.b16 %v2756
          %v2844 = vunpack.c.l.b16 %v2757
          %v2845 = vunpack.c.h.b16 %v2757
          %v2846 = vunpack.c.l.b16 %v2758
          %v2847 = vunpack.c.h.b16 %v2758
          %v2848 = vunpack.c.l.b16 %v2759
          %v2849 = vunpack.c.h.b16 %v2759
          %v2850 = vunpack.c.l.b16 %v2760
          %v2851 = vunpack.c.h.b16 %v2760
          %v2852 = vunpack.c.l.b16 %v2761
          %v2853 = vunpack.c.h.b16 %v2761
          %v2854 = vunpack.c.l.b16 %v2762
          %v2855 = vunpack.c.h.b16 %v2762
          %v2856 = vunpack.c.l.b16 %v2763
          %v2857 = vunpack.c.h.b16 %v2763
          %v2858 = vunpack.c.l.b16 %v2764
          %v2859 = vunpack.c.h.b16 %v2764
          %v2860 = vunpack.c.l.b16 %v2765
          %v2861 = vunpack.c.h.b16 %v2765
          %v2862 = vpack.c.b16 %v2798, %v2798
          %v2863 = vpack.c.b16 %v2799, %v2799
          %v2864 = vpack.c.b16 %v2800, %v2800
          %v2865 = vpack.c.b16 %v2801, %v2801
          %v2866 = vpack.c.b16 %v2802, %v2802
          %v2867 = vpack.c.b16 %v2803, %v2803
          %v2868 = vpack.c.b16 %v2804, %v2804
          %v2869 = vpack.c.b16 %v2805, %v2805
          %v2870 = vpack.c.b16 %v2806, %v2806
          %v2871 = vpack.c.b16 %v2807, %v2807
          %v2872 = vpack.c.b16 %v2808, %v2808
          %v2873 = vpack.c.b16 %v2809, %v2809
          %v2874 = vpack.c.b16 %v2810, %v2810
          %v2875 = vpack.c.b16 %v2811, %v2811
          %v2876 = vpack.c.b16 %v2812, %v2812
          %v2877 = vpack.c.b16 %v2813, %v2813
          %v2878 = vpack.c.b16 %v2814, %v2814
          %v2879 = vpack.c.b16 %v2815, %v2815
          %v2880 = vpack.c.b16 %v2816, %v2816
          %v2881 = vpack.c.b16 %v2817, %v2817
          %v2882 = vpack.c.b16 %v2818, %v2818
          %v2883 = vpack.c.b16 %v2819, %v2819
          %v2884 = vpack.c.b16 %v2820, %v2820
          %v2885 = vpack.c.b16 %v2821, %v2821
          %v2886 = vpack.c.b16 %v2822, %v2822
          %v2887 = vpack.c.b16 %v2823, %v2823
          %v2888 = vpack.c.b16 %v2824, %v2824
          %v2889 = vpack.c.b16 %v2825, %v2825
          %v2890 = vpack.c.b16 %v2826, %v2826
          %v2891 = vpack.c.b16 %v2827, %v2827
          %v2892 = vpack.c.b16 %v2828, %v2828
          %v2893 = vpack.c.b16 %v2829, %v2829
          %v2894 = vpack.c.b16 %v2830, %v2830
          %v2895 = vpack.c.b16 %v2831, %v2831
          %v2896 = vpack.c.b16 %v2832, %v2832
          %v2897 = vpack.c.b16 %v2833, %v2833
          %v2898 = vpack.c.b16 %v2834, %v2834
          %v2899 = vpack.c.b16 %v2835, %v2835
          %v2900 = vpack.c.b16 %v2836, %v2836
          %v2901 = vpack.c.b16 %v2837, %v2837
          %v2902 = vpack.c.b16 %v2838, %v2838
          %v2903 = vpack.c.b16 %v2839, %v2839
          %v2904 = vpack.c.b16 %v2840, %v2840
          %v2905 = vpack.c.b16 %v2841, %v2841
          %v2906 = vpack.c.b16 %v2842, %v2842
          %v2907 = vpack.c.b16 %v2843, %v2843
          %v2908 = vpack.c.b16 %v2844, %v2844
          %v2909 = vpack.c.b16 %v2845, %v2845
          %v2910 = vpack.c.b16 %v2846, %v2846
          %v2911 = vpack.c.b16 %v2847, %v2847
          %v2912 = vpack.c.b16 %v2848, %v2848
          %v2913 = vpack.c.b16 %v2849, %v2849
          %v2914 = vpack.c.b16 %v2850, %v2850
          %v2915 = vpack.c.b16 %v2851, %v2851
          %v2916 = vpack.c.b16 %v2852, %v2852
          %v2917 = vpack.c.b16 %v2853, %v2853
          %v2918 = vpack.c.b16 %v2854, %v2854
          %v2919 = vpack.c.b16 %v2855, %v2855
          %v2920 = vpack.c.b16 %v2856, %v2856
          %v2921 = vpack.c.b16 %v2857, %v2857
          %v2922 = vpack.c.b16 %v2858, %v2858
          %v2923 = vpack.c.b16 %v2859, %v2859
          %v2924 = vpack.c.b16 %v2860, %v2860
          %v2925 = vpack.c.b16 %v2861, %v2861
          %2990 = vst [vmem:[%s274] sm:$0xf] %v2862
          %2991 = vst [vmem:[%s274 + $0x4] sm:$0xf] %v2863
          %2992 = vst [vmem:[%s274 + $0x8] sm:$0xf] %v2864
          %2993 = vst [vmem:[%s274 + $0xc] sm:$0xf] %v2865
          %2994 = vst [vmem:[%s274 + $0x10] sm:$0xf] %v2866
          %2995 = vst [vmem:[%s274 + $0x14] sm:$0xf] %v2867
          %2996 = vst [vmem:[%s274 + $0x18] sm:$0xf] %v2868
          %2997 = vst [vmem:[%s274 + $0x1c] sm:$0xf] %v2869
          %2998 = vst [vmem:[%s274 + $0x20] sm:$0xf] %v2870
          %2999 = vst [vmem:[%s274 + $0x24] sm:$0xf] %v2871
          %3000 = vst [vmem:[%s274 + $0x28] sm:$0xf] %v2872
          %3001 = vst [vmem:[%s274 + $0x2c] sm:$0xf] %v2873
          %3002 = vst [vmem:[%s274 + $0x30] sm:$0xf] %v2874
          %3003 = vst [vmem:[%s274 + $0x34] sm:$0xf] %v2875
          %3004 = vst [vmem:[%s274 + $0x38] sm:$0xf] %v2876
          %3005 = vst [vmem:[%s274 + $0x3c] sm:$0xf] %v2877
          %3006 = vst [vmem:[%s274 + $0x40] sm:$0xf] %v2878
          %3007 = vst [vmem:[%s274 + $0x44] sm:$0xf] %v2879
          %3008 = vst [vmem:[%s274 + $0x48] sm:$0xf] %v2880
          %3009 = vst [vmem:[%s274 + $0x4c] sm:$0xf] %v2881
          %3010 = vst [vmem:[%s274 + $0x50] sm:$0xf] %v2882
          %3011 = vst [vmem:[%s274 + $0x54] sm:$0xf] %v2883
          %3012 = vst [vmem:[%s274 + $0x58] sm:$0xf] %v2884
          %3013 = vst [vmem:[%s274 + $0x5c] sm:$0xf] %v2885
          %3014 = vst [vmem:[%s274 + $0x60] sm:$0xf] %v2886
          %3015 = vst [vmem:[%s274 + $0x64] sm:$0xf] %v2887
          %3016 = vst [vmem:[%s274 + $0x68] sm:$0xf] %v2888
          %3017 = vst [vmem:[%s274 + $0x6c] sm:$0xf] %v2889
          %3018 = vst [vmem:[%s274 + $0x70] sm:$0xf] %v2890
          %3019 = vst [vmem:[%s274 + $0x74] sm:$0xf] %v2891
          %3020 = vst [vmem:[%s274 + $0x78] sm:$0xf] %v2892
          %3021 = vst [vmem:[%s274 + $0x7c] sm:$0xf] %v2893
          %3022 = vst [vmem:[%s274 + $0x80] sm:$0xf] %v2894
          %3023 = vst [vmem:[%s274 + $0x84] sm:$0xf] %v2895
          %3024 = vst [vmem:[%s274 + $0x88] sm:$0xf] %v2896
          %3025 = vst [vmem:[%s274 + $0x8c] sm:$0xf] %v2897
          %3026 = vst [vmem:[%s274 + $0x90] sm:$0xf] %v2898
          %3027 = vst [vmem:[%s274 + $0x94] sm:$0xf] %v2899
          %3028 = vst [vmem:[%s274 + $0x98] sm:$0xf] %v2900
          %3029 = vst [vmem:[%s274 + $0x9c] sm:$0xf] %v2901
          %3030 = vst [vmem:[%s274 + $0xa0] sm:$0xf] %v2902
          %3031 = vst [vmem:[%s274 + $0xa4] sm:$0xf] %v2903
          %3032 = vst [vmem:[%s274 + $0xa8] sm:$0xf] %v2904
          %3033 = vst [vmem:[%s274 + $0xac] sm:$0xf] %v2905
          %3034 = vst [vmem:[%s274 + $0xb0] sm:$0xf] %v2906
          %3035 = vst [vmem:[%s274 + $0xb4] sm:$0xf] %v2907
          %3036 = vst [vmem:[%s274 + $0xb8] sm:$0xf] %v2908
          %3037 = vst [vmem:[%s274 + $0xbc] sm:$0xf] %v2909
          %3038 = vst [vmem:[%s274 + $0xc0] sm:$0xf] %v2910
          %3039 = vst [vmem:[%s274 + $0xc4] sm:$0xf] %v2911
          %3040 = vst [vmem:[%s274 + $0xc8] sm:$0xf] %v2912
          %3041 = vst [vmem:[%s274 + $0xcc] sm:$0xf] %v2913
          %3042 = vst [vmem:[%s274 + $0xd0] sm:$0xf] %v2914
          %3043 = vst [vmem:[%s274 + $0xd4] sm:$0xf] %v2915
          %3044 = vst [vmem:[%s274 + $0xd8] sm:$0xf] %v2916
          %3045 = vst [vmem:[%s274 + $0xdc] sm:$0xf] %v2917
          %3046 = vst [vmem:[%s274 + $0xe0] sm:$0xf] %v2918
          %3047 = vst [vmem:[%s274 + $0xe4] sm:$0xf] %v2919
          %3048 = vst [vmem:[%s274 + $0xe8] sm:$0xf] %v2920
          %3049 = vst [vmem:[%s274 + $0xec] sm:$0xf] %v2921
          %3050 = vst [vmem:[%s274 + $0xf0] sm:$0xf] %v2922
          %3051 = vst [vmem:[%s274 + $0xf4] sm:$0xf] %v2923
          %3052 = vst [vmem:[%s274 + $0xf8] sm:$0xf] %v2924
          %3053 = vst [vmem:[%s274 + $0xfc] sm:$0xf] %v2925
        $region60: #{tpu_custom_call.1} parent=35 // pred_fallthru
          _
        %s3054 = sand.u32 %s134, 1
        %s3055 = scalar_lea.sflag [#allocation5], %s3054
        %s3056 = sand.u32 %s134, 1
        %s3057 = smul.addr %s3056, 256
        %s3058 = scalar_lea.vmem [#allocation11], %s3057
        // Predicated region
        $region61: #{tpu_custom_call.1} parent=35 // pred_check
          %p3059 = pneg %p144
        $region62: #{tpu_custom_call.1} parent=35 // pred_check_branch
          %3061 = sbr.rel (%p3059) target = $region64
        $region63: #{tpu_custom_call.1} parent=35 // pred_region
          %s3062 = smul.u32 64, %s27
          %s3064 = ssub.s32 4096, 4096
          %3065 = vsyncadd %s3055, %s3064
          %s3066 = smul.addr %s3062, 64
          %s3067 = scalar_lea.hbm %s4, %s3066
          %s3068 = sshll.u32 %s3058, 4
          %s3069 = int_to_ptr.vmem [resolvable:$true] %s3068
          %3074 = dma.vmem_to_hbm [thread:$0]  %s3069, 4096, %s3067, %s3055, 64, 64, 4
        $region64: #{tpu_custom_call.1} parent=35 // pred_fallthru
          _
      $region36: #{tpu_custom_call.1} parent=5 // pred_fallthru
        _
      %p3075 = scmp.le.s32.totalorder 2, %s18
      // Predicated region
      $region65: #{tpu_custom_call.1} parent=5 // pred_check
        %p3076 = pneg %p3075
      $region66: #{tpu_custom_call.1} parent=5 // pred_check_branch
        %3078 = sbr.rel (%p3076) target = $region68
      $region67: #{tpu_custom_call.1} parent=5 // pred_region
        %s3079 = ssub.s32 %s18, 2
        // Predicated region
        $region69: #{tpu_custom_call.1} parent=67 // pred_check
          %p3080 = pneg %p150
        $region70: #{tpu_custom_call.1} parent=67 // pred_check_branch
          %3082 = sbr.rel (%p3080) target = $region72
        $region71: #{tpu_custom_call.1} parent=67 // pred_region
          %s3083 = sand.u32 %s135, 1
          %s3084 = scalar_lea.sflag [#allocation5], %s3083
          %s3085 = sand.u32 %s135, 1
          %s3086 = smul.addr %s3085, 256
          %s3087 = scalar_lea.vmem [#allocation11], %s3086
          %3088 = dma.done %s3084, 4096
        $region72: #{tpu_custom_call.1} parent=67 // pred_fallthru
          _
      $region68: #{tpu_custom_call.1} parent=5 // pred_fallthru
        _
    $region6: #{tpu_custom_call.1} parent=1 // loop_footer
      %s22 = sadd.s32 1, %s18
    $region7: #{tpu_custom_call.1} parent=1 // loop_footer_branch
      %17 = sbr.rel target = $region3
    $region8: #{tpu_custom_call.1} parent=1 // loop_exit
      _
    %3089 = vsyncpa [#allocation4], 1
    %s3090 = scalar_lea.sflag [#allocation4], 1
    %3091 = vsyncpa %s3090, 1
    %3092 = vsyncpa [#allocation7], 1
    %3093 = vsyncpa [#allocation10], 1
    %3094 = vsyncpa [#allocation5], 1
    %s3095 = scalar_lea.sflag [#allocation5], 1
    %3096 = vsyncpa %s3095, 1

</llo_original>
